<compile_context>
chip_gen: v6e
topology: v6e:2x2x1
jax: 0.10.0
libtpu: 0.0.40
codegen_flags: <defaults>
</compile_context>

<pallas_src>
import jax
import jax.numpy as jnp
from jax import lax
from jax.experimental import pallas as pl
from jax.experimental.pallas import tpu as pltpu

B = 2
C_IN = 3                       # conv1 hard-codes 3 input channels
C_OUT = 3
H = W = 32                     # Linear(300, .) => 3 * 10 * 10 => 32x32 input
K = 4
PAD_W = W + 2                  # 34: zero-padded frame width / height
FRAME = PAD_W * PAD_W          # 1156: flattened padded frame
CONV_H = H + 2 - K + 1         # 31
POOL = 3
POOL_H = CONV_H // POOL        # 10
PER_CH = POOL_H * POOL_H       # 100
FEAT = C_OUT * PER_CH          # 300
NUM_CLASSES = 10
BN_EPS = 1e-5

ROWS = B * C_OUT               # 6 rows, row index = b*3 + channel
TAPS = K * K                   # 16 conv taps
ACC_W = 1024                   # conv-accumulator lane width
# Largest lane that the pool selection reads from cmax: 3*9*34 + 3*9 = 945.
SEL_W = POOL * PAD_W * (POOL_H - 1) + POOL * (POOL_H - 1) + 1   # 946

# Static safety checks (brittle-offset concerns from the review).
assert (K - 1) * (PAD_W + 1) + ACC_W <= FRAME, "conv tap reads past padded frame"
assert SEL_W + (POOL - 1) + (POOL - 1) * PAD_W <= ACC_W, "pool reads past conv acc"


def fused_kernel(xf_ref, lhs_ref, cb_ref, sel_ref, red_ref, pmix_ref,
                 g_ref, bta_ref, wl_ref, lb_ref, o_ref, stage_ref):
    # ---- im2col-style staging: one 8-sublane-aligned (8, ACC_W) tile per tap -
    xf = xf_ref[...]                                    # (6, 1156) padded frames
    zpad = jnp.zeros((8 - ROWS, ACC_W), jnp.float32)    # keep MXU rows 6..7 clean
    for kh in range(K):
        for kw in range(K):
            t = kh * K + kw
            s = kh * PAD_W + kw                         # lane shift of this tap
            stage_ref[t * 8:(t + 1) * 8, :] = jnp.concatenate(
                [xf[:, s:s + ACC_W], zpad], axis=0)

    # ---- Conv2d(3,3,k=4,pad=1) + bias + ReLU: ONE (6,128)x(128,1024) matmul --
    acc = jnp.dot(lhs_ref[...], stage_ref[...],
                  preferred_element_type=jnp.float32)   # (6, ACC_W)
    racc = jnp.maximum(acc + cb_ref[...], 0.0)
    # NOTE: lanes whose column index (lane % 34) is in {31, 32, 33} hold finite
    # cross-row garbage; the one-hot `sel` matmul never routes them to an output.

    # ---- MaxPool2d(3,3): shifted maxes + ONE one-hot selection matmul --------
    w1 = ACC_W - (POOL - 1) * PAD_W                     # 956
    rmax = jnp.maximum(jnp.maximum(racc[:, 0:w1],
                                   racc[:, PAD_W:PAD_W + w1]),
                       racc[:, 2 * PAD_W:2 * PAD_W + w1])
    cmax = jnp.maximum(jnp.maximum(rmax[:, 0:SEL_W], rmax[:, 1:1 + SEL_W]),
                       rmax[:, 2:2 + SEL_W])            # (6, SEL_W)
    pooled = jnp.dot(cmax, sel_ref[...],
                     preferred_element_type=jnp.float32)            # (6, 100)

    # ---- BatchNorm2d (training-mode batch stats) on the MXU ------------------
    stats = jnp.dot(jnp.concatenate([pooled, pooled * pooled], axis=1),
                    red_ref[...], preferred_element_type=jnp.float32)  # (6, 2)
    tot = jnp.dot(pmix_ref[...], stats,
                  preferred_element_type=jnp.float32)   # (6, 2): per-channel sums
    n_el = float(B * PER_CH)                            # 200 elements / channel
    mean = tot[:, 0:1] / n_el
    var = tot[:, 1:2] / n_el - mean * mean              # biased var (training BN)
    scale = g_ref[...] * lax.rsqrt(var + BN_EPS)        # (6, 1)
    shift = bta_ref[...] - mean * scale                 # (6, 1)
    normed = pooled * scale + shift                     # (6, 100)

    # ---- Linear(300, 10): one (6,100)x(100,30) matmul + lane-block folding ---
    prod = jnp.dot(normed, wl_ref[...], preferred_element_type=jnp.float32)
    nc = NUM_CLASSES
    r0 = prod[0:1, 0:nc] + prod[1:2, nc:2 * nc] + prod[2:3, 2 * nc:3 * nc]
    r1 = prod[3:4, 0:nc] + prod[4:5, nc:2 * nc] + prod[5:6, 2 * nc:3 * nc]
    o_ref[...] = jnp.concatenate([r0, r1], axis=0) + lb_ref[...]


def prepare_params(conv_w, conv_b, bn_gamma, bn_beta, lin_w, lin_b):
    """Parameter/constant preprocessing, done once outside the jitted forward."""
    f32 = jnp.float32
    # Conv LHS (6, 128): block t holds the (kh,kw)-tap channel-mix matrix,
    # block-diagonal over the batch; MXU rows 6..7 of each 8-row block stay 0.
    wt = jnp.transpose(conv_w, (2, 3, 0, 1)).reshape(TAPS, C_OUT, C_IN)
    lhs = jnp.zeros((ROWS, TAPS * 8), f32)
    for t in range(TAPS):
        for b in range(B):
            lhs = lhs.at[b * C_OUT:(b + 1) * C_OUT,
                         t * 8 + b * C_IN:t * 8 + b * C_IN + C_IN].set(wt[t])
    cb6 = jnp.tile(conv_b, (B,)).reshape(ROWS, 1).astype(f32)
    # Pool selection one-hot: sel[l, i0*10 + j0] = 1 iff l == 102*i0 + 3*j0.
    pidx = (POOL * PAD_W) * (jnp.arange(PER_CH) // POOL_H) \
        + POOL * (jnp.arange(PER_CH) % POOL_H)
    sel = (jnp.arange(SEL_W)[:, None] == pidx[None, :]).astype(f32)
    # BN reducers: (200, 2) block-ones (sum | sum-of-squares) and the (6, 6)
    # same-channel combiner pmix[r, r'] = 1 iff r % 3 == r' % 3.
    red = jnp.kron(jnp.eye(2, dtype=f32), jnp.ones((PER_CH, 1), f32))
    pmix = (jnp.arange(ROWS)[:, None] % C_OUT ==
            jnp.arange(ROWS)[None, :] % C_OUT).astype(f32)
    g6 = jnp.tile(bn_gamma, (B,)).reshape(ROWS, 1).astype(f32)
    b6 = jnp.tile(bn_beta, (B,)).reshape(ROWS, 1).astype(f32)
    # Linear weight pre-permuted: wl[p, c*10 + k] = lin_w[k, c*100 + p] (100, 30).
    wl = jnp.transpose(lin_w.reshape(NUM_CLASSES, C_OUT, PER_CH),
                       (2, 1, 0)).reshape(PER_CH, C_OUT * NUM_CLASSES)
    lb2 = lin_b.reshape(1, NUM_CLASSES).astype(f32)
    return lhs, cb6, sel, red, pmix, g6, b6, wl, lb2


@jax.jit
def model_forward(x, lhs, cb6, sel, red, pmix, g6, b6, wl, lb2):
    # Zero-pad + flatten OUTSIDE the kernel; XLA folds this into the input DMA.
    x6 = x.reshape(ROWS, H, W)                 # contiguous: row = b*3 + channel
    xflat = jnp.pad(x6, ((0, 0), (1, 1), (1, 1))).reshape(ROWS, FRAME)
    vmem = pl.BlockSpec(memory_space=pltpu.MemorySpace.VMEM)
    return pl.pallas_call(
        fused_kernel,
        out_shape=jax.ShapeDtypeStruct((B, NUM_CLASSES), jnp.float32),
        in_specs=[vmem] * 10,
        out_specs=vmem,
        scratch_shapes=[
            pltpu.VMEM((TAPS * 8, ACC_W), jnp.float32),   # im2col staging (512 KB)
        ],
    )(xflat, lhs, cb6, sel, red, pmix, g6, b6, wl, lb2)


def reference(x, conv_w, conv_b, bn_gamma, bn_beta, lin_w, lin_b):
    # Pure-JAX reference of the torch forward (training-mode BatchNorm).
    y = lax.conv_general_dilated(x, conv_w, (1, 1), ((1, 1), (1, 1)),
                                 dimension_numbers=('NCHW', 'OIHW', 'NCHW'),
                                 precision=lax.Precision.HIGHEST)
    y = jnp.maximum(y + conv_b[None, :, None, None], 0.0)
    y = lax.reduce_window(y, -jnp.inf, lax.max, (1, 1, POOL, POOL),
                          (1, 1, POOL, POOL), 'VALID')
    mean = jnp.mean(y, axis=(0, 2, 3), keepdims=True)
    var = jnp.mean((y - mean) ** 2, axis=(0, 2, 3), keepdims=True)
    y = (y - mean) * lax.rsqrt(var + BN_EPS)
    y = y * bn_gamma[None, :, None, None] + bn_beta[None, :, None, None]
    flat = y.reshape(y.shape[0], -1)
    return jnp.dot(flat, lin_w.T, precision=lax.Precision.HIGHEST) + lin_b


if __name__ == "__main__":
    key = jax.random.PRNGKey(0)
    ks = jax.random.split(key, 5)

    # Deterministic parameter init (shapes match the torch module).
    bound_c = 1.0 / (C_IN * K * K) ** 0.5
    conv_w = jax.random.uniform(ks[0], (C_OUT, C_IN, K, K), jnp.float32, -bound_c, bound_c)
    conv_b = jax.random.uniform(ks[1], (C_OUT,), jnp.float32, -bound_c, bound_c)
    bn_gamma = jnp.ones((C_OUT,), jnp.float32)     # BatchNorm2d default affine init
    bn_beta = jnp.zeros((C_OUT,), jnp.float32)
    bound_l = 1.0 / FEAT ** 0.5
    lin_w = jax.random.uniform(ks[2], (NUM_CLASSES, FEAT), jnp.float32, -bound_l, bound_l)
    lin_b = jax.random.uniform(ks[3], (NUM_CLASSES,), jnp.float32, -bound_l, bound_l)

    x = jax.random.normal(ks[4], (B, C_IN, H, W), jnp.float32)

    params = prepare_params(conv_w, conv_b, bn_gamma, bn_beta, lin_w, lin_b)

    out = model_forward(x, *params)
    out = jax.block_until_ready(out)
    assert out.shape == (B, NUM_CLASSES)

    ref = reference(x, conv_w, conv_b, bn_gamma, bn_beta, lin_w, lin_b)
    assert bool(jnp.allclose(out, ref, rtol=2e-2, atol=2e-2)), "mismatch vs JAX reference"

    # TODO(synk): BatchNorm running-stat updates (a training-time side effect) are not modeled.
    print("KERNEL_OK")
</pallas_src>

<mosaic_0001>
module attributes {stable_mosaic.version = 11 : i64} {
  func.func @fused_kernel(%arg0: memref<6x1156xf32, #tpu.memory_space<vmem>>, %arg1: memref<6x128xf32, #tpu.memory_space<vmem>>, %arg2: memref<6x1xf32, #tpu.memory_space<vmem>>, %arg3: memref<946x100xf32, #tpu.memory_space<vmem>>, %arg4: memref<200x2xf32, #tpu.memory_space<vmem>>, %arg5: memref<6x6xf32, #tpu.memory_space<vmem>>, %arg6: memref<6x1xf32, #tpu.memory_space<vmem>>, %arg7: memref<6x1xf32, #tpu.memory_space<vmem>>, %arg8: memref<100x30xf32, #tpu.memory_space<vmem>>, %arg9: memref<1x10xf32, #tpu.memory_space<vmem>>, %arg10: memref<2x10xf32, #tpu.memory_space<vmem>>, %arg11: memref<128x1024xf32, #tpu.memory_space<vmem>>) attributes {dimension_semantics = [], scalar_prefetch = 0 : i64, scratch_operands = 1 : i64, tpu.core_type = #tpu.core_type<tc>} {
    %c0 = arith.constant 0 : index
    %c0_0 = arith.constant 0 : index
    %0 = vector.load %arg0[%c0, %c0_0] : memref<6x1156xf32, #tpu.memory_space<vmem>>, vector<6x1156xf32>
    %cst = arith.constant 0.000000e+00 : f32
    %1 = vector.broadcast %cst : f32 to vector<2x1024xf32>
    %2 = vector.extract_strided_slice %0 {offsets = [0, 0], sizes = [6, 1024], strides = [1, 1]} : vector<6x1156xf32> to vector<6x1024xf32>
    %3 = tpu.concatenate %2, %1 in 0 : vector<6x1024xf32>, vector<2x1024xf32> -> vector<8x1024xf32>
    %c0_1 = arith.constant 0 : index
    %c0_2 = arith.constant 0 : index
    %4 = vector.load %arg11[%c0_1, %c0_2] : memref<128x1024xf32, #tpu.memory_space<vmem>>, vector<8x1024xf32>
    tpu.vector_store %arg11[%c0_1, %c0_2], %3 {strides = array<i32>} : memref<128x1024xf32, #tpu.memory_space<vmem>>, vector<8x1024xf32>,
    %5 = vector.extract_strided_slice %0 {offsets = [0, 1], sizes = [6, 1024], strides = [1, 1]} : vector<6x1156xf32> to vector<6x1024xf32>
    %6 = tpu.concatenate %5, %1 in 0 : vector<6x1024xf32>, vector<2x1024xf32> -> vector<8x1024xf32>
    %c8 = arith.constant 8 : index
    %c0_3 = arith.constant 0 : index
    %7 = vector.load %arg11[%c8, %c0_3] : memref<128x1024xf32, #tpu.memory_space<vmem>>, vector<8x1024xf32>
    tpu.vector_store %arg11[%c8, %c0_3], %6 {strides = array<i32>} : memref<128x1024xf32, #tpu.memory_space<vmem>>, vector<8x1024xf32>,
    %8 = vector.extract_strided_slice %0 {offsets = [0, 2], sizes = [6, 1024], strides = [1, 1]} : vector<6x1156xf32> to vector<6x1024xf32>
    %9 = tpu.concatenate %8, %1 in 0 : vector<6x1024xf32>, vector<2x1024xf32> -> vector<8x1024xf32>
    %c16 = arith.constant 16 : index
    %c0_4 = arith.constant 0 : index
    %10 = vector.load %arg11[%c16, %c0_4] : memref<128x1024xf32, #tpu.memory_space<vmem>>, vector<8x1024xf32>
    tpu.vector_store %arg11[%c16, %c0_4], %9 {strides = array<i32>} : memref<128x1024xf32, #tpu.memory_space<vmem>>, vector<8x1024xf32>,
    %11 = vector.extract_strided_slice %0 {offsets = [0, 3], sizes = [6, 1024], strides = [1, 1]} : vector<6x1156xf32> to vector<6x1024xf32>
    %12 = tpu.concatenate %11, %1 in 0 : vector<6x1024xf32>, vector<2x1024xf32> -> vector<8x1024xf32>
    %c24 = arith.constant 24 : index
    %c0_5 = arith.constant 0 : index
    %13 = vector.load %arg11[%c24, %c0_5] : memref<128x1024xf32, #tpu.memory_space<vmem>>, vector<8x1024xf32>
    tpu.vector_store %arg11[%c24, %c0_5], %12 {strides = array<i32>} : memref<128x1024xf32, #tpu.memory_space<vmem>>, vector<8x1024xf32>,
    %14 = vector.extract_strided_slice %0 {offsets = [0, 34], sizes = [6, 1024], strides = [1, 1]} : vector<6x1156xf32> to vector<6x1024xf32>
    %15 = tpu.concatenate %14, %1 in 0 : vector<6x1024xf32>, vector<2x1024xf32> -> vector<8x1024xf32>
    %c32 = arith.constant 32 : index
    %c0_6 = arith.constant 0 : index
    %16 = vector.load %arg11[%c32, %c0_6] : memref<128x1024xf32, #tpu.memory_space<vmem>>, vector<8x1024xf32>
    tpu.vector_store %arg11[%c32, %c0_6], %15 {strides = array<i32>} : memref<128x1024xf32, #tpu.memory_space<vmem>>, vector<8x1024xf32>,
    %17 = vector.extract_strided_slice %0 {offsets = [0, 35], sizes = [6, 1024], strides = [1, 1]} : vector<6x1156xf32> to vector<6x1024xf32>
    %18 = tpu.concatenate %17, %1 in 0 : vector<6x1024xf32>, vector<2x1024xf32> -> vector<8x1024xf32>
    %c40 = arith.constant 40 : index
    %c0_7 = arith.constant 0 : index
    %19 = vector.load %arg11[%c40, %c0_7] : memref<128x1024xf32, #tpu.memory_space<vmem>>, vector<8x1024xf32>
    tpu.vector_store %arg11[%c40, %c0_7], %18 {strides = array<i32>} : memref<128x1024xf32, #tpu.memory_space<vmem>>, vector<8x1024xf32>,
    %20 = vector.extract_strided_slice %0 {offsets = [0, 36], sizes = [6, 1024], strides = [1, 1]} : vector<6x1156xf32> to vector<6x1024xf32>
    %21 = tpu.concatenate %20, %1 in 0 : vector<6x1024xf32>, vector<2x1024xf32> -> vector<8x1024xf32>
    %c48 = arith.constant 48 : index
    %c0_8 = arith.constant 0 : index
    %22 = vector.load %arg11[%c48, %c0_8] : memref<128x1024xf32, #tpu.memory_space<vmem>>, vector<8x1024xf32>
    tpu.vector_store %arg11[%c48, %c0_8], %21 {strides = array<i32>} : memref<128x1024xf32, #tpu.memory_space<vmem>>, vector<8x1024xf32>,
    %23 = vector.extract_strided_slice %0 {offsets = [0, 37], sizes = [6, 1024], strides = [1, 1]} : vector<6x1156xf32> to vector<6x1024xf32>
    %24 = tpu.concatenate %23, %1 in 0 : vector<6x1024xf32>, vector<2x1024xf32> -> vector<8x1024xf32>
    %c56 = arith.constant 56 : index
    %c0_9 = arith.constant 0 : index
    %25 = vector.load %arg11[%c56, %c0_9] : memref<128x1024xf32, #tpu.memory_space<vmem>>, vector<8x1024xf32>
    tpu.vector_store %arg11[%c56, %c0_9], %24 {strides = array<i32>} : memref<128x1024xf32, #tpu.memory_space<vmem>>, vector<8x1024xf32>,
    %26 = vector.extract_strided_slice %0 {offsets = [0, 68], sizes = [6, 1024], strides = [1, 1]} : vector<6x1156xf32> to vector<6x1024xf32>
    %27 = tpu.concatenate %26, %1 in 0 : vector<6x1024xf32>, vector<2x1024xf32> -> vector<8x1024xf32>
    %c64 = arith.constant 64 : index
    %c0_10 = arith.constant 0 : index
    %28 = vector.load %arg11[%c64, %c0_10] : memref<128x1024xf32, #tpu.memory_space<vmem>>, vector<8x1024xf32>
    tpu.vector_store %arg11[%c64, %c0_10], %27 {strides = array<i32>} : memref<128x1024xf32, #tpu.memory_space<vmem>>, vector<8x1024xf32>,
    %29 = vector.extract_strided_slice %0 {offsets = [0, 69], sizes = [6, 1024], strides = [1, 1]} : vector<6x1156xf32> to vector<6x1024xf32>
    %30 = tpu.concatenate %29, %1 in 0 : vector<6x1024xf32>, vector<2x1024xf32> -> vector<8x1024xf32>
    %c72 = arith.constant 72 : index
    %c0_11 = arith.constant 0 : index
    %31 = vector.load %arg11[%c72, %c0_11] : memref<128x1024xf32, #tpu.memory_space<vmem>>, vector<8x1024xf32>
    tpu.vector_store %arg11[%c72, %c0_11], %30 {strides = array<i32>} : memref<128x1024xf32, #tpu.memory_space<vmem>>, vector<8x1024xf32>,
    %32 = vector.extract_strided_slice %0 {offsets = [0, 70], sizes = [6, 1024], strides = [1, 1]} : vector<6x1156xf32> to vector<6x1024xf32>
    %33 = tpu.concatenate %32, %1 in 0 : vector<6x1024xf32>, vector<2x1024xf32> -> vector<8x1024xf32>
    %c80 = arith.constant 80 : index
    %c0_12 = arith.constant 0 : index
    %34 = vector.load %arg11[%c80, %c0_12] : memref<128x1024xf32, #tpu.memory_space<vmem>>, vector<8x1024xf32>
    tpu.vector_store %arg11[%c80, %c0_12], %33 {strides = array<i32>} : memref<128x1024xf32, #tpu.memory_space<vmem>>, vector<8x1024xf32>,
    %35 = vector.extract_strided_slice %0 {offsets = [0, 71], sizes = [6, 1024], strides = [1, 1]} : vector<6x1156xf32> to vector<6x1024xf32>
    %36 = tpu.concatenate %35, %1 in 0 : vector<6x1024xf32>, vector<2x1024xf32> -> vector<8x1024xf32>
    %c88 = arith.constant 88 : index
    %c0_13 = arith.constant 0 : index
    %37 = vector.load %arg11[%c88, %c0_13] : memref<128x1024xf32, #tpu.memory_space<vmem>>, vector<8x1024xf32>
    tpu.vector_store %arg11[%c88, %c0_13], %36 {strides = array<i32>} : memref<128x1024xf32, #tpu.memory_space<vmem>>, vector<8x1024xf32>,
    %38 = vector.extract_strided_slice %0 {offsets = [0, 102], sizes = [6, 1024], strides = [1, 1]} : vector<6x1156xf32> to vector<6x1024xf32>
    %39 = tpu.concatenate %38, %1 in 0 : vector<6x1024xf32>, vector<2x1024xf32> -> vector<8x1024xf32>
    %c96 = arith.constant 96 : index
    %c0_14 = arith.constant 0 : index
    %40 = vector.load %arg11[%c96, %c0_14] : memref<128x1024xf32, #tpu.memory_space<vmem>>, vector<8x1024xf32>
    tpu.vector_store %arg11[%c96, %c0_14], %39 {strides = array<i32>} : memref<128x1024xf32, #tpu.memory_space<vmem>>, vector<8x1024xf32>,
    %41 = vector.extract_strided_slice %0 {offsets = [0, 103], sizes = [6, 1024], strides = [1, 1]} : vector<6x1156xf32> to vector<6x1024xf32>
    %42 = tpu.concatenate %41, %1 in 0 : vector<6x1024xf32>, vector<2x1024xf32> -> vector<8x1024xf32>
    %c104 = arith.constant 104 : index
    %c0_15 = arith.constant 0 : index
    %43 = vector.load %arg11[%c104, %c0_15] : memref<128x1024xf32, #tpu.memory_space<vmem>>, vector<8x1024xf32>
    tpu.vector_store %arg11[%c104, %c0_15], %42 {strides = array<i32>} : memref<128x1024xf32, #tpu.memory_space<vmem>>, vector<8x1024xf32>,
    %44 = vector.extract_strided_slice %0 {offsets = [0, 104], sizes = [6, 1024], strides = [1, 1]} : vector<6x1156xf32> to vector<6x1024xf32>
    %45 = tpu.concatenate %44, %1 in 0 : vector<6x1024xf32>, vector<2x1024xf32> -> vector<8x1024xf32>
    %c112 = arith.constant 112 : index
    %c0_16 = arith.constant 0 : index
    %46 = vector.load %arg11[%c112, %c0_16] : memref<128x1024xf32, #tpu.memory_space<vmem>>, vector<8x1024xf32>
    tpu.vector_store %arg11[%c112, %c0_16], %45 {strides = array<i32>} : memref<128x1024xf32, #tpu.memory_space<vmem>>, vector<8x1024xf32>,
    %47 = vector.extract_strided_slice %0 {offsets = [0, 105], sizes = [6, 1024], strides = [1, 1]} : vector<6x1156xf32> to vector<6x1024xf32>
    %48 = tpu.concatenate %47, %1 in 0 : vector<6x1024xf32>, vector<2x1024xf32> -> vector<8x1024xf32>
    %c120 = arith.constant 120 : index
    %c0_17 = arith.constant 0 : index
    %49 = vector.load %arg11[%c120, %c0_17] : memref<128x1024xf32, #tpu.memory_space<vmem>>, vector<8x1024xf32>
    tpu.vector_store %arg11[%c120, %c0_17], %48 {strides = array<i32>} : memref<128x1024xf32, #tpu.memory_space<vmem>>, vector<8x1024xf32>,
    %c0_18 = arith.constant 0 : index
    %c0_19 = arith.constant 0 : index
    %50 = vector.load %arg1[%c0_18, %c0_19] : memref<6x128xf32, #tpu.memory_space<vmem>>, vector<6x128xf32>
    %c0_20 = arith.constant 0 : index
    %c0_21 = arith.constant 0 : index
    %51 = vector.load %arg11[%c0_20, %c0_21] : memref<128x1024xf32, #tpu.memory_space<vmem>>, vector<128x1024xf32>
    %cst_22 = arith.constant dense<0.000000e+00> : vector<6x1024xf32>
    %52 = tpu.matmul %50, %51, %cst_22 {dimension_numbers = #tpu.dot_dimension_numbers<[1], [0], [0], [1], [0, 0, 1, 1], [], []>} : vector<6x128xf32>, vector<128x1024xf32>, vector<6x1024xf32> -> vector<6x1024xf32>
    %c0_23 = arith.constant 0 : index
    %c0_24 = arith.constant 0 : index
    %53 = vector.load %arg2[%c0_23, %c0_24] : memref<6x1xf32, #tpu.memory_space<vmem>>, vector<6x1xf32>
    %54 = vector.broadcast %53 : vector<6x1xf32> to vector<6x1024xf32>
    %55 = arith.addf %52, %54 : vector<6x1024xf32>
    %cst_25 = arith.constant 0.000000e+00 : f32
    %56 = vector.broadcast %cst_25 : f32 to vector<6x1024xf32>
    %57 = arith.maximumf %55, %56 : vector<6x1024xf32>
    %58 = vector.extract_strided_slice %57 {offsets = [0, 0], sizes = [6, 956], strides = [1, 1]} : vector<6x1024xf32> to vector<6x956xf32>
    %59 = vector.extract_strided_slice %57 {offsets = [0, 34], sizes = [6, 956], strides = [1, 1]} : vector<6x1024xf32> to vector<6x956xf32>
    %60 = arith.maximumf %58, %59 : vector<6x956xf32>
    %61 = vector.extract_strided_slice %57 {offsets = [0, 68], sizes = [6, 956], strides = [1, 1]} : vector<6x1024xf32> to vector<6x956xf32>
    %62 = arith.maximumf %60, %61 : vector<6x956xf32>
    %63 = vector.extract_strided_slice %62 {offsets = [0, 0], sizes = [6, 946], strides = [1, 1]} : vector<6x956xf32> to vector<6x946xf32>
    %64 = vector.extract_strided_slice %62 {offsets = [0, 1], sizes = [6, 946], strides = [1, 1]} : vector<6x956xf32> to vector<6x946xf32>
    %65 = arith.maximumf %63, %64 : vector<6x946xf32>
    %66 = vector.extract_strided_slice %62 {offsets = [0, 2], sizes = [6, 946], strides = [1, 1]} : vector<6x956xf32> to vector<6x946xf32>
    %67 = arith.maximumf %65, %66 : vector<6x946xf32>
    %c0_26 = arith.constant 0 : index
    %c0_27 = arith.constant 0 : index
    %68 = vector.load %arg3[%c0_26, %c0_27] : memref<946x100xf32, #tpu.memory_space<vmem>>, vector<946x100xf32>
    %cst_28 = arith.constant dense<0.000000e+00> : vector<6x100xf32>
    %69 = tpu.matmul %67, %68, %cst_28 {dimension_numbers = #tpu.dot_dimension_numbers<[1], [0], [0], [1], [0, 0, 1, 1], [], []>} : vector<6x946xf32>, vector<946x100xf32>, vector<6x100xf32> -> vector<6x100xf32>
    %70 = arith.mulf %69, %69 : vector<6x100xf32>
    %71 = tpu.concatenate %69, %70 in 1 : vector<6x100xf32>, vector<6x100xf32> -> vector<6x200xf32>
    %c0_29 = arith.constant 0 : index
    %c0_30 = arith.constant 0 : index
    %72 = vector.load %arg4[%c0_29, %c0_30] : memref<200x2xf32, #tpu.memory_space<vmem>>, vector<200x2xf32>
    %cst_31 = arith.constant dense<0.000000e+00> : vector<6x2xf32>
    %73 = tpu.matmul %71, %72, %cst_31 {dimension_numbers = #tpu.dot_dimension_numbers<[1], [0], [0], [1], [0, 0, 1, 1], [], []>} : vector<6x200xf32>, vector<200x2xf32>, vector<6x2xf32> -> vector<6x2xf32>
    %c0_32 = arith.constant 0 : index
    %c0_33 = arith.constant 0 : index
    %74 = vector.load %arg5[%c0_32, %c0_33] : memref<6x6xf32, #tpu.memory_space<vmem>>, vector<6x6xf32>
    %cst_34 = arith.constant dense<0.000000e+00> : vector<6x2xf32>
    %75 = tpu.matmul %74, %73, %cst_34 {dimension_numbers = #tpu.dot_dimension_numbers<[1], [0], [0], [1], [0, 0, 1, 1], [], []>} : vector<6x6xf32>, vector<6x2xf32>, vector<6x2xf32> -> vector<6x2xf32>
    %76 = vector.extract_strided_slice %75 {offsets = [0, 0], sizes = [6, 1], strides = [1, 1]} : vector<6x2xf32> to vector<6x1xf32>
    %cst_35 = arith.constant 2.000000e+02 : f32
    %77 = vector.broadcast %cst_35 : f32 to vector<6x1xf32>
    %78 = arith.divf %76, %77 : vector<6x1xf32>
    %79 = vector.extract_strided_slice %75 {offsets = [0, 1], sizes = [6, 1], strides = [1, 1]} : vector<6x2xf32> to vector<6x1xf32>
    %cst_36 = arith.constant 2.000000e+02 : f32
    %80 = vector.broadcast %cst_36 : f32 to vector<6x1xf32>
    %81 = arith.divf %79, %80 : vector<6x1xf32>
    %82 = arith.mulf %78, %78 : vector<6x1xf32>
    %83 = arith.subf %81, %82 : vector<6x1xf32>
    %c0_37 = arith.constant 0 : index
    %c0_38 = arith.constant 0 : index
    %84 = vector.load %arg6[%c0_37, %c0_38] : memref<6x1xf32, #tpu.memory_space<vmem>>, vector<6x1xf32>
    %cst_39 = arith.constant 9.99999974E-6 : f32
    %85 = vector.broadcast %cst_39 : f32 to vector<6x1xf32>
    %86 = arith.addf %83, %85 : vector<6x1xf32>
    %87 = math.rsqrt %86 : vector<6x1xf32>
    %88 = arith.mulf %84, %87 : vector<6x1xf32>
    %c0_40 = arith.constant 0 : index
    %c0_41 = arith.constant 0 : index
    %89 = vector.load %arg7[%c0_40, %c0_41] : memref<6x1xf32, #tpu.memory_space<vmem>>, vector<6x1xf32>
    %90 = arith.mulf %78, %88 : vector<6x1xf32>
    %91 = arith.subf %89, %90 : vector<6x1xf32>
    %92 = vector.broadcast %88 : vector<6x1xf32> to vector<6x100xf32>
    %93 = arith.mulf %69, %92 : vector<6x100xf32>
    %94 = vector.broadcast %91 : vector<6x1xf32> to vector<6x100xf32>
    %95 = arith.addf %93, %94 : vector<6x100xf32>
    %c0_42 = arith.constant 0 : index
    %c0_43 = arith.constant 0 : index
    %96 = vector.load %arg8[%c0_42, %c0_43] : memref<100x30xf32, #tpu.memory_space<vmem>>, vector<100x30xf32>
    %cst_44 = arith.constant dense<0.000000e+00> : vector<6x30xf32>
    %97 = tpu.matmul %95, %96, %cst_44 {dimension_numbers = #tpu.dot_dimension_numbers<[1], [0], [0], [1], [0, 0, 1, 1], [], []>} : vector<6x100xf32>, vector<100x30xf32>, vector<6x30xf32> -> vector<6x30xf32>
    %98 = vector.extract_strided_slice %97 {offsets = [0, 0], sizes = [1, 10], strides = [1, 1]} : vector<6x30xf32> to vector<1x10xf32>
    %99 = vector.extract_strided_slice %97 {offsets = [1, 10], sizes = [1, 10], strides = [1, 1]} : vector<6x30xf32> to vector<1x10xf32>
    %100 = arith.addf %98, %99 : vector<1x10xf32>
    %101 = vector.extract_strided_slice %97 {offsets = [2, 20], sizes = [1, 10], strides = [1, 1]} : vector<6x30xf32> to vector<1x10xf32>
    %102 = arith.addf %100, %101 : vector<1x10xf32>
    %103 = vector.extract_strided_slice %97 {offsets = [3, 0], sizes = [1, 10], strides = [1, 1]} : vector<6x30xf32> to vector<1x10xf32>
    %104 = vector.extract_strided_slice %97 {offsets = [4, 10], sizes = [1, 10], strides = [1, 1]} : vector<6x30xf32> to vector<1x10xf32>
    %105 = arith.addf %103, %104 : vector<1x10xf32>
    %106 = vector.extract_strided_slice %97 {offsets = [5, 20], sizes = [1, 10], strides = [1, 1]} : vector<6x30xf32> to vector<1x10xf32>
    %107 = arith.addf %105, %106 : vector<1x10xf32>
    %108 = tpu.concatenate %102, %107 in 0 : vector<1x10xf32>, vector<1x10xf32> -> vector<2x10xf32>
    %c0_45 = arith.constant 0 : index
    %c0_46 = arith.constant 0 : index
    %109 = vector.load %arg9[%c0_45, %c0_46] : memref<1x10xf32, #tpu.memory_space<vmem>>, vector<1x10xf32>
    %110 = vector.broadcast %109 : vector<1x10xf32> to vector<2x10xf32>
    %111 = arith.addf %108, %110 : vector<2x10xf32>
    %c0_47 = arith.constant 0 : index
    %c0_48 = arith.constant 0 : index
    %112 = vector.load %arg10[%c0_47, %c0_48] : memref<2x10xf32, #tpu.memory_space<vmem>>, vector<2x10xf32>
    tpu.vector_store %arg10[%c0_47, %c0_48], %111 {strides = array<i32>} : memref<2x10xf32, #tpu.memory_space<vmem>>, vector<2x10xf32>,
    return
  }
}

</mosaic_0001>

<llo_original>
// kernel: model_forward.1
$region0: #{model_forward.1}
  #allocation0 [shape = 'u32[]', space=smem, size = 0x4, offset = 0x4, fixed_abs, tag = 'smem constant byte address 0x4 - core index']
  #allocation1 [shape = 'u32[144,128]{1,0:T(1,128)}', space=vmem, size = 0x12000, scoped, tag = 'internal scratch']
  #allocation2 [shape = 'f32[128,1024]{1,0:T(8,128)}', space=vmem, size = 0x80000, scoped, tag = 'scratch operand']
  %s0 = inlined_call_operand.vmem [shape: f32[6,1156], index: 0, kind: input, shape index: {}]
  %s1 = inlined_call_operand.vmem [shape: f32[6,128], index: 1, kind: input, shape index: {}]
  %s2 = inlined_call_operand.vmem [shape: f32[6,1], index: 2, kind: input, shape index: {}]
  %s3 = inlined_call_operand.vmem [shape: f32[946,100], index: 3, kind: input, shape index: {}]
  %s4 = inlined_call_operand.vmem [shape: f32[200,2], index: 4, kind: input, shape index: {}]
  %s5 = inlined_call_operand.vmem [shape: f32[6,6], index: 5, kind: input, shape index: {}]
  %s6 = inlined_call_operand.vmem [shape: f32[6,1], index: 6, kind: input, shape index: {}]
  %s7 = inlined_call_operand.vmem [shape: f32[6,1], index: 7, kind: input, shape index: {}]
  %s8 = inlined_call_operand.vmem [shape: f32[100,30], index: 8, kind: input, shape index: {}]
  %s9 = inlined_call_operand.vmem [shape: f32[1,10], index: 9, kind: input, shape index: {}]
  %s10 = inlined_call_operand.hbm [shape: f32[2,10], index: 10, kind: output, shape index: {}]
  %s11 = sld [smem:[#allocation0]]
  $region50: #{model_forward.1} parent=0
    _
  %s13 = ssub.s32 1, %s11
  %s14 = scalar_select 0, %s13, %s11
  $region1: #{model_forward.1} parent=0
    #allocation3 [shape = 'u8[1024]{0}', space=vmem, size = 0x400, scoped, tag = 'output window, operand 0, single buffered']
    #allocation4 [shape = 's32[1]{0}', space=sflag, size = 0x4, scoped, tag = 'scoped memory for model_forward.1']
    %15 = vsyncpa [#allocation4], 0
    // Predicated region
    $region2: #{model_forward.1} parent=1 // pred_check
      _
    $region3: #{model_forward.1} parent=1 // pred_check_branch
      %17 = sbr.rel (0) target = $region5
    $region4: #{model_forward.1} parent=1 // pred_region
      _
    $region5: #{model_forward.1} parent=1 // pred_fallthru
      _
    // Predicated region
    $region6: #{model_forward.1} parent=1 // pred_check
      _
    $region7: #{model_forward.1} parent=1 // pred_check_branch
      %19 = sbr.rel (0) target = $region9
    $region8: #{model_forward.1} parent=1 // pred_region
      _
    $region9: #{model_forward.1} parent=1 // pred_fallthru
      _
    // Predicated region
    $region10: #{model_forward.1} parent=1 // pred_check
      _
    $region11: #{model_forward.1} parent=1 // pred_check_branch
      %21 = sbr.rel (0) target = $region13
    $region12: #{model_forward.1} parent=1 // pred_region
      _
    $region13: #{model_forward.1} parent=1 // pred_fallthru
      _
    // Predicated region
    $region14: #{model_forward.1} parent=1 // pred_check
      _
    $region15: #{model_forward.1} parent=1 // pred_check_branch
      %23 = sbr.rel (0) target = $region17
    $region16: #{model_forward.1} parent=1 // pred_region
      _
    $region17: #{model_forward.1} parent=1 // pred_fallthru
      _
    // Predicated region
    $region18: #{model_forward.1} parent=1 // pred_check
      _
    $region19: #{model_forward.1} parent=1 // pred_check_branch
      %25 = sbr.rel (0) target = $region21
    $region20: #{model_forward.1} parent=1 // pred_region
      _
    $region21: #{model_forward.1} parent=1 // pred_fallthru
      _
    // Predicated region
    $region22: #{model_forward.1} parent=1 // pred_check
      _
    $region23: #{model_forward.1} parent=1 // pred_check_branch
      %27 = sbr.rel (0) target = $region25
    $region24: #{model_forward.1} parent=1 // pred_region
      _
    $region25: #{model_forward.1} parent=1 // pred_fallthru
      _
    // Predicated region
    $region26: #{model_forward.1} parent=1 // pred_check
      _
    $region27: #{model_forward.1} parent=1 // pred_check_branch
      %29 = sbr.rel (0) target = $region29
    $region28: #{model_forward.1} parent=1 // pred_region
      _
    $region29: #{model_forward.1} parent=1 // pred_fallthru
      _
    // Predicated region
    $region30: #{model_forward.1} parent=1 // pred_check
      _
    $region31: #{model_forward.1} parent=1 // pred_check_branch
      %31 = sbr.rel (0) target = $region33
    $region32: #{model_forward.1} parent=1 // pred_region
      _
    $region33: #{model_forward.1} parent=1 // pred_fallthru
      _
    // Predicated region
    $region34: #{model_forward.1} parent=1 // pred_check
      _
    $region35: #{model_forward.1} parent=1 // pred_check_branch
      %33 = sbr.rel (0) target = $region37
    $region36: #{model_forward.1} parent=1 // pred_region
      _
    $region37: #{model_forward.1} parent=1 // pred_fallthru
      _
    // Predicated region
    $region38: #{model_forward.1} parent=1 // pred_check
      _
    $region39: #{model_forward.1} parent=1 // pred_check_branch
      %35 = sbr.rel (0) target = $region41
    $region40: #{model_forward.1} parent=1 // pred_region
      _
    $region41: #{model_forward.1} parent=1 // pred_fallthru
      _
    %v36 = vld [vmem:[%s0] sm:$0x3f]
    %v37 = vld [vmem:[%s0 + $0x8] sm:$0x3f]
    %v38 = vld [vmem:[%s0 + $0x10] sm:$0x3f]
    %v39 = vld [vmem:[%s0 + $0x18] sm:$0x3f]
    %v40 = vld [vmem:[%s0 + $0x20] sm:$0x3f]
    %v41 = vld [vmem:[%s0 + $0x28] sm:$0x3f]
    %v42 = vld [vmem:[%s0 + $0x30] sm:$0x3f]
    %v43 = vld [vmem:[%s0 + $0x38] sm:$0x3f]
    %v44 = vld [vmem:[%s0 + $0x40] sm:$0x3f]
    %vm45 = vcmask 1045504
    %v46 = vsel %vm45, %v36, 0.0
    %v47 = vsel %vm45, %v37, 0.0
    %v48 = vsel %vm45, %v38, 0.0
    %v49 = vsel %vm45, %v39, 0.0
    %v50 = vsel %vm45, %v40, 0.0
    %v51 = vsel %vm45, %v41, 0.0
    %v52 = vsel %vm45, %v42, 0.0
    %v53 = vsel %vm45, %v43, 0.0
    %54 = vst [vmem:[#allocation2] sm:$0xff] %v46
    %55 = vst [vmem:[#allocation2 + $0x8] sm:$0xff] %v47
    %56 = vst [vmem:[#allocation2 + $0x10] sm:$0xff] %v48
    %57 = vst [vmem:[#allocation2 + $0x18] sm:$0xff] %v49
    %58 = vst [vmem:[#allocation2 + $0x20] sm:$0xff] %v50
    %59 = vst [vmem:[#allocation2 + $0x28] sm:$0xff] %v51
    %60 = vst [vmem:[#allocation2 + $0x30] sm:$0xff] %v52
    %61 = vst [vmem:[#allocation2 + $0x38] sm:$0xff] %v53
    %v62 = vsel %vm45, %v44, 0.0
    %72 = vrot.lane.b32.xlu0 %v46, 127
    %v73 = vpop.permute.xlu0 %72
    %74 = vrot.lane.b32.xlu0 %v47, 127
    %v75 = vpop.permute.xlu0 %74
    %76 = vrot.lane.b32.xlu0 %v48, 127
    %v77 = vpop.permute.xlu0 %76
    %78 = vrot.lane.b32.xlu0 %v49, 127
    %v79 = vpop.permute.xlu0 %78
    %80 = vrot.lane.b32.xlu0 %v50, 127
    %v81 = vpop.permute.xlu0 %80
    %82 = vrot.lane.b32.xlu0 %v51, 127
    %v83 = vpop.permute.xlu0 %82
    %84 = vrot.lane.b32.xlu0 %v52, 127
    %v85 = vpop.permute.xlu0 %84
    %86 = vrot.lane.b32.xlu0 %v53, 127
    %v87 = vpop.permute.xlu0 %86
    %88 = vrot.lane.b32.xlu0 %v62, 127
    %v89 = vpop.permute.xlu0 %88
    %vm90 = vcmask 1039360
    %v91 = vsel %vm90, %v73, %v75
    %v92 = vsel %vm90, %v75, %v77
    %v93 = vsel %vm90, %v77, %v79
    %v94 = vsel %vm90, %v79, %v81
    %v95 = vsel %vm90, %v81, %v83
    %v96 = vsel %vm90, %v83, %v85
    %v97 = vsel %vm90, %v85, %v87
    %v98 = vsel %vm90, %v87, %v89
    %107 = vst [vmem:[#allocation2 + $0x40] sm:$0xff] %v91
    %108 = vst [vmem:[#allocation2 + $0x48] sm:$0xff] %v92
    %109 = vst [vmem:[#allocation2 + $0x50] sm:$0xff] %v93
    %110 = vst [vmem:[#allocation2 + $0x58] sm:$0xff] %v94
    %111 = vst [vmem:[#allocation2 + $0x60] sm:$0xff] %v95
    %112 = vst [vmem:[#allocation2 + $0x68] sm:$0xff] %v96
    %113 = vst [vmem:[#allocation2 + $0x70] sm:$0xff] %v97
    %114 = vst [vmem:[#allocation2 + $0x78] sm:$0xff] %v98
    %115 = vrot.lane.b32.xlu0 %v46, 126
    %v116 = vpop.permute.xlu0 %115
    %117 = vrot.lane.b32.xlu0 %v47, 126
    %v118 = vpop.permute.xlu0 %117
    %119 = vrot.lane.b32.xlu0 %v48, 126
    %v120 = vpop.permute.xlu0 %119
    %121 = vrot.lane.b32.xlu0 %v49, 126
    %v122 = vpop.permute.xlu0 %121
    %123 = vrot.lane.b32.xlu0 %v50, 126
    %v124 = vpop.permute.xlu0 %123
    %125 = vrot.lane.b32.xlu0 %v51, 126
    %v126 = vpop.permute.xlu0 %125
    %127 = vrot.lane.b32.xlu0 %v52, 126
    %v128 = vpop.permute.xlu0 %127
    %129 = vrot.lane.b32.xlu0 %v53, 126
    %v130 = vpop.permute.xlu0 %129
    %131 = vrot.lane.b32.xlu0 %v62, 126
    %v132 = vpop.permute.xlu0 %131
    %vm133 = vcmask 1031168
    %v134 = vsel %vm133, %v116, %v118
    %v135 = vsel %vm133, %v118, %v120
    %v136 = vsel %vm133, %v120, %v122
    %v137 = vsel %vm133, %v122, %v124
    %v138 = vsel %vm133, %v124, %v126
    %v139 = vsel %vm133, %v126, %v128
    %v140 = vsel %vm133, %v128, %v130
    %v141 = vsel %vm133, %v130, %v132
    %150 = vst [vmem:[#allocation2 + $0x80] sm:$0xff] %v134
    %151 = vst [vmem:[#allocation2 + $0x88] sm:$0xff] %v135
    %152 = vst [vmem:[#allocation2 + $0x90] sm:$0xff] %v136
    %153 = vst [vmem:[#allocation2 + $0x98] sm:$0xff] %v137
    %154 = vst [vmem:[#allocation2 + $0xa0] sm:$0xff] %v138
    %155 = vst [vmem:[#allocation2 + $0xa8] sm:$0xff] %v139
    %156 = vst [vmem:[#allocation2 + $0xb0] sm:$0xff] %v140
    %157 = vst [vmem:[#allocation2 + $0xb8] sm:$0xff] %v141
    %158 = vrot.lane.b32.xlu0 %v46, 125
    %v159 = vpop.permute.xlu0 %158
    %160 = vrot.lane.b32.xlu0 %v47, 125
    %v161 = vpop.permute.xlu0 %160
    %162 = vrot.lane.b32.xlu0 %v48, 125
    %v163 = vpop.permute.xlu0 %162
    %164 = vrot.lane.b32.xlu0 %v49, 125
    %v165 = vpop.permute.xlu0 %164
    %166 = vrot.lane.b32.xlu0 %v50, 125
    %v167 = vpop.permute.xlu0 %166
    %168 = vrot.lane.b32.xlu0 %v51, 125
    %v169 = vpop.permute.xlu0 %168
    %170 = vrot.lane.b32.xlu0 %v52, 125
    %v171 = vpop.permute.xlu0 %170
    %172 = vrot.lane.b32.xlu0 %v53, 125
    %v173 = vpop.permute.xlu0 %172
    %174 = vrot.lane.b32.xlu0 %v62, 125
    %v175 = vpop.permute.xlu0 %174
    %vm176 = vcmask 1022976
    %v177 = vsel %vm176, %v159, %v161
    %v178 = vsel %vm176, %v161, %v163
    %v179 = vsel %vm176, %v163, %v165
    %v180 = vsel %vm176, %v165, %v167
    %v181 = vsel %vm176, %v167, %v169
    %v182 = vsel %vm176, %v169, %v171
    %v183 = vsel %vm176, %v171, %v173
    %v184 = vsel %vm176, %v173, %v175
    %193 = vst [vmem:[#allocation2 + $0xc0] sm:$0xff] %v177
    %194 = vst [vmem:[#allocation2 + $0xc8] sm:$0xff] %v178
    %195 = vst [vmem:[#allocation2 + $0xd0] sm:$0xff] %v179
    %196 = vst [vmem:[#allocation2 + $0xd8] sm:$0xff] %v180
    %197 = vst [vmem:[#allocation2 + $0xe0] sm:$0xff] %v181
    %198 = vst [vmem:[#allocation2 + $0xe8] sm:$0xff] %v182
    %199 = vst [vmem:[#allocation2 + $0xf0] sm:$0xff] %v183
    %200 = vst [vmem:[#allocation2 + $0xf8] sm:$0xff] %v184
    %201 = vrot.lane.b32.xlu0 %v46, 94
    %v202 = vpop.permute.xlu0 %201
    %203 = vrot.lane.b32.xlu0 %v47, 94
    %v204 = vpop.permute.xlu0 %203
    %205 = vrot.lane.b32.xlu0 %v48, 94
    %v206 = vpop.permute.xlu0 %205
    %207 = vrot.lane.b32.xlu0 %v49, 94
    %v208 = vpop.permute.xlu0 %207
    %209 = vrot.lane.b32.xlu0 %v50, 94
    %v210 = vpop.permute.xlu0 %209
    %211 = vrot.lane.b32.xlu0 %v51, 94
    %v212 = vpop.permute.xlu0 %211
    %213 = vrot.lane.b32.xlu0 %v52, 94
    %v214 = vpop.permute.xlu0 %213
    %215 = vrot.lane.b32.xlu0 %v53, 94
    %v216 = vpop.permute.xlu0 %215
    %217 = vrot.lane.b32.xlu0 %v62, 94
    %v218 = vpop.permute.xlu0 %217
    %vm219 = vcmask 769024
    %v220 = vsel %vm219, %v202, %v204
    %v221 = vsel %vm219, %v204, %v206
    %v222 = vsel %vm219, %v206, %v208
    %v223 = vsel %vm219, %v208, %v210
    %v224 = vsel %vm219, %v210, %v212
    %v225 = vsel %vm219, %v212, %v214
    %v226 = vsel %vm219, %v214, %v216
    %v227 = vsel %vm219, %v216, %v218
    %236 = vst [vmem:[#allocation2 + $0x100] sm:$0xff] %v220
    %237 = vst [vmem:[#allocation2 + $0x108] sm:$0xff] %v221
    %238 = vst [vmem:[#allocation2 + $0x110] sm:$0xff] %v222
    %239 = vst [vmem:[#allocation2 + $0x118] sm:$0xff] %v223
    %240 = vst [vmem:[#allocation2 + $0x120] sm:$0xff] %v224
    %241 = vst [vmem:[#allocation2 + $0x128] sm:$0xff] %v225
    %242 = vst [vmem:[#allocation2 + $0x130] sm:$0xff] %v226
    %243 = vst [vmem:[#allocation2 + $0x138] sm:$0xff] %v227
    %244 = vrot.lane.b32.xlu0 %v46, 93
    %v245 = vpop.permute.xlu0 %244
    %246 = vrot.lane.b32.xlu0 %v47, 93
    %v247 = vpop.permute.xlu0 %246
    %248 = vrot.lane.b32.xlu0 %v48, 93
    %v249 = vpop.permute.xlu0 %248
    %250 = vrot.lane.b32.xlu0 %v49, 93
    %v251 = vpop.permute.xlu0 %250
    %252 = vrot.lane.b32.xlu0 %v50, 93
    %v253 = vpop.permute.xlu0 %252
    %254 = vrot.lane.b32.xlu0 %v51, 93
    %v255 = vpop.permute.xlu0 %254
    %256 = vrot.lane.b32.xlu0 %v52, 93
    %v257 = vpop.permute.xlu0 %256
    %258 = vrot.lane.b32.xlu0 %v53, 93
    %v259 = vpop.permute.xlu0 %258
    %260 = vrot.lane.b32.xlu0 %v62, 93
    %v261 = vpop.permute.xlu0 %260
    %vm262 = vcmask 760832
    %v263 = vsel %vm262, %v245, %v247
    %v264 = vsel %vm262, %v247, %v249
    %v265 = vsel %vm262, %v249, %v251
    %v266 = vsel %vm262, %v251, %v253
    %v267 = vsel %vm262, %v253, %v255
    %v268 = vsel %vm262, %v255, %v257
    %v269 = vsel %vm262, %v257, %v259
    %v270 = vsel %vm262, %v259, %v261
    %279 = vst [vmem:[#allocation2 + $0x140] sm:$0xff] %v263
    %280 = vst [vmem:[#allocation2 + $0x148] sm:$0xff] %v264
    %281 = vst [vmem:[#allocation2 + $0x150] sm:$0xff] %v265
    %282 = vst [vmem:[#allocation2 + $0x158] sm:$0xff] %v266
    %283 = vst [vmem:[#allocation2 + $0x160] sm:$0xff] %v267
    %284 = vst [vmem:[#allocation2 + $0x168] sm:$0xff] %v268
    %285 = vst [vmem:[#allocation2 + $0x170] sm:$0xff] %v269
    %286 = vst [vmem:[#allocation2 + $0x178] sm:$0xff] %v270
    %287 = vrot.lane.b32.xlu0 %v46, 92
    %v288 = vpop.permute.xlu0 %287
    %289 = vrot.lane.b32.xlu0 %v47, 92
    %v290 = vpop.permute.xlu0 %289
    %291 = vrot.lane.b32.xlu0 %v48, 92
    %v292 = vpop.permute.xlu0 %291
    %293 = vrot.lane.b32.xlu0 %v49, 92
    %v294 = vpop.permute.xlu0 %293
    %295 = vrot.lane.b32.xlu0 %v50, 92
    %v296 = vpop.permute.xlu0 %295
    %297 = vrot.lane.b32.xlu0 %v51, 92
    %v298 = vpop.permute.xlu0 %297
    %299 = vrot.lane.b32.xlu0 %v52, 92
    %v300 = vpop.permute.xlu0 %299
    %301 = vrot.lane.b32.xlu0 %v53, 92
    %v302 = vpop.permute.xlu0 %301
    %303 = vrot.lane.b32.xlu0 %v62, 92
    %v304 = vpop.permute.xlu0 %303
    %vm305 = vcmask 752640
    %v306 = vsel %vm305, %v288, %v290
    %v307 = vsel %vm305, %v290, %v292
    %v308 = vsel %vm305, %v292, %v294
    %v309 = vsel %vm305, %v294, %v296
    %v310 = vsel %vm305, %v296, %v298
    %v311 = vsel %vm305, %v298, %v300
    %v312 = vsel %vm305, %v300, %v302
    %v313 = vsel %vm305, %v302, %v304
    %322 = vst [vmem:[#allocation2 + $0x180] sm:$0xff] %v306
    %323 = vst [vmem:[#allocation2 + $0x188] sm:$0xff] %v307
    %324 = vst [vmem:[#allocation2 + $0x190] sm:$0xff] %v308
    %325 = vst [vmem:[#allocation2 + $0x198] sm:$0xff] %v309
    %326 = vst [vmem:[#allocation2 + $0x1a0] sm:$0xff] %v310
    %327 = vst [vmem:[#allocation2 + $0x1a8] sm:$0xff] %v311
    %328 = vst [vmem:[#allocation2 + $0x1b0] sm:$0xff] %v312
    %329 = vst [vmem:[#allocation2 + $0x1b8] sm:$0xff] %v313
    %330 = vrot.lane.b32.xlu0 %v46, 91
    %v331 = vpop.permute.xlu0 %330
    %332 = vrot.lane.b32.xlu0 %v47, 91
    %v333 = vpop.permute.xlu0 %332
    %334 = vrot.lane.b32.xlu0 %v48, 91
    %v335 = vpop.permute.xlu0 %334
    %336 = vrot.lane.b32.xlu0 %v49, 91
    %v337 = vpop.permute.xlu0 %336
    %338 = vrot.lane.b32.xlu0 %v50, 91
    %v339 = vpop.permute.xlu0 %338
    %340 = vrot.lane.b32.xlu0 %v51, 91
    %v341 = vpop.permute.xlu0 %340
    %342 = vrot.lane.b32.xlu0 %v52, 91
    %v343 = vpop.permute.xlu0 %342
    %344 = vrot.lane.b32.xlu0 %v53, 91
    %v345 = vpop.permute.xlu0 %344
    %346 = vrot.lane.b32.xlu0 %v62, 91
    %v347 = vpop.permute.xlu0 %346
    %vm348 = vcmask 744448
    %v349 = vsel %vm348, %v331, %v333
    %v350 = vsel %vm348, %v333, %v335
    %v351 = vsel %vm348, %v335, %v337
    %v352 = vsel %vm348, %v337, %v339
    %v353 = vsel %vm348, %v339, %v341
    %v354 = vsel %vm348, %v341, %v343
    %v355 = vsel %vm348, %v343, %v345
    %v356 = vsel %vm348, %v345, %v347
    %365 = vst [vmem:[#allocation2 + $0x1c0] sm:$0xff] %v349
    %366 = vst [vmem:[#allocation2 + $0x1c8] sm:$0xff] %v350
    %367 = vst [vmem:[#allocation2 + $0x1d0] sm:$0xff] %v351
    %368 = vst [vmem:[#allocation2 + $0x1d8] sm:$0xff] %v352
    %369 = vst [vmem:[#allocation2 + $0x1e0] sm:$0xff] %v353
    %370 = vst [vmem:[#allocation2 + $0x1e8] sm:$0xff] %v354
    %371 = vst [vmem:[#allocation2 + $0x1f0] sm:$0xff] %v355
    %372 = vst [vmem:[#allocation2 + $0x1f8] sm:$0xff] %v356
    %373 = vrot.lane.b32.xlu0 %v46, 60
    %v374 = vpop.permute.xlu0 %373
    %375 = vrot.lane.b32.xlu0 %v47, 60
    %v376 = vpop.permute.xlu0 %375
    %377 = vrot.lane.b32.xlu0 %v48, 60
    %v378 = vpop.permute.xlu0 %377
    %379 = vrot.lane.b32.xlu0 %v49, 60
    %v380 = vpop.permute.xlu0 %379
    %381 = vrot.lane.b32.xlu0 %v50, 60
    %v382 = vpop.permute.xlu0 %381
    %383 = vrot.lane.b32.xlu0 %v51, 60
    %v384 = vpop.permute.xlu0 %383
    %385 = vrot.lane.b32.xlu0 %v52, 60
    %v386 = vpop.permute.xlu0 %385
    %387 = vrot.lane.b32.xlu0 %v53, 60
    %v388 = vpop.permute.xlu0 %387
    %389 = vrot.lane.b32.xlu0 %v62, 60
    %v390 = vpop.permute.xlu0 %389
    %vm391 = vcmask 490496
    %v392 = vsel %vm391, %v374, %v376
    %v393 = vsel %vm391, %v376, %v378
    %v394 = vsel %vm391, %v378, %v380
    %v395 = vsel %vm391, %v380, %v382
    %v396 = vsel %vm391, %v382, %v384
    %v397 = vsel %vm391, %v384, %v386
    %v398 = vsel %vm391, %v386, %v388
    %v399 = vsel %vm391, %v388, %v390
    %408 = vst [vmem:[#allocation2 + $0x200] sm:$0xff] %v392
    %409 = vst [vmem:[#allocation2 + $0x208] sm:$0xff] %v393
    %410 = vst [vmem:[#allocation2 + $0x210] sm:$0xff] %v394
    %411 = vst [vmem:[#allocation2 + $0x218] sm:$0xff] %v395
    %412 = vst [vmem:[#allocation2 + $0x220] sm:$0xff] %v396
    %413 = vst [vmem:[#allocation2 + $0x228] sm:$0xff] %v397
    %414 = vst [vmem:[#allocation2 + $0x230] sm:$0xff] %v398
    %415 = vst [vmem:[#allocation2 + $0x238] sm:$0xff] %v399
    %416 = vrot.lane.b32.xlu0 %v46, 59
    %v417 = vpop.permute.xlu0 %416
    %418 = vrot.lane.b32.xlu0 %v47, 59
    %v419 = vpop.permute.xlu0 %418
    %420 = vrot.lane.b32.xlu0 %v48, 59
    %v421 = vpop.permute.xlu0 %420
    %422 = vrot.lane.b32.xlu0 %v49, 59
    %v423 = vpop.permute.xlu0 %422
    %424 = vrot.lane.b32.xlu0 %v50, 59
    %v425 = vpop.permute.xlu0 %424
    %426 = vrot.lane.b32.xlu0 %v51, 59
    %v427 = vpop.permute.xlu0 %426
    %428 = vrot.lane.b32.xlu0 %v52, 59
    %v429 = vpop.permute.xlu0 %428
    %430 = vrot.lane.b32.xlu0 %v53, 59
    %v431 = vpop.permute.xlu0 %430
    %432 = vrot.lane.b32.xlu0 %v62, 59
    %v433 = vpop.permute.xlu0 %432
    %vm434 = vcmask 482304
    %v435 = vsel %vm434, %v417, %v419
    %v436 = vsel %vm434, %v419, %v421
    %v437 = vsel %vm434, %v421, %v423
    %v438 = vsel %vm434, %v423, %v425
    %v439 = vsel %vm434, %v425, %v427
    %v440 = vsel %vm434, %v427, %v429
    %v441 = vsel %vm434, %v429, %v431
    %v442 = vsel %vm434, %v431, %v433
    %451 = vst [vmem:[#allocation2 + $0x240] sm:$0xff] %v435
    %452 = vst [vmem:[#allocation2 + $0x248] sm:$0xff] %v436
    %453 = vst [vmem:[#allocation2 + $0x250] sm:$0xff] %v437
    %454 = vst [vmem:[#allocation2 + $0x258] sm:$0xff] %v438
    %455 = vst [vmem:[#allocation2 + $0x260] sm:$0xff] %v439
    %456 = vst [vmem:[#allocation2 + $0x268] sm:$0xff] %v440
    %457 = vst [vmem:[#allocation2 + $0x270] sm:$0xff] %v441
    %458 = vst [vmem:[#allocation2 + $0x278] sm:$0xff] %v442
    %459 = vrot.lane.b32.xlu0 %v46, 58
    %v460 = vpop.permute.xlu0 %459
    %461 = vrot.lane.b32.xlu0 %v47, 58
    %v462 = vpop.permute.xlu0 %461
    %463 = vrot.lane.b32.xlu0 %v48, 58
    %v464 = vpop.permute.xlu0 %463
    %465 = vrot.lane.b32.xlu0 %v49, 58
    %v466 = vpop.permute.xlu0 %465
    %467 = vrot.lane.b32.xlu0 %v50, 58
    %v468 = vpop.permute.xlu0 %467
    %469 = vrot.lane.b32.xlu0 %v51, 58
    %v470 = vpop.permute.xlu0 %469
    %471 = vrot.lane.b32.xlu0 %v52, 58
    %v472 = vpop.permute.xlu0 %471
    %473 = vrot.lane.b32.xlu0 %v53, 58
    %v474 = vpop.permute.xlu0 %473
    %475 = vrot.lane.b32.xlu0 %v62, 58
    %v476 = vpop.permute.xlu0 %475
    %vm477 = vcmask 474112
    %v478 = vsel %vm477, %v460, %v462
    %v479 = vsel %vm477, %v462, %v464
    %v480 = vsel %vm477, %v464, %v466
    %v481 = vsel %vm477, %v466, %v468
    %v482 = vsel %vm477, %v468, %v470
    %v483 = vsel %vm477, %v470, %v472
    %v484 = vsel %vm477, %v472, %v474
    %v485 = vsel %vm477, %v474, %v476
    %494 = vst [vmem:[#allocation2 + $0x280] sm:$0xff] %v478
    %495 = vst [vmem:[#allocation2 + $0x288] sm:$0xff] %v479
    %496 = vst [vmem:[#allocation2 + $0x290] sm:$0xff] %v480
    %497 = vst [vmem:[#allocation2 + $0x298] sm:$0xff] %v481
    %498 = vst [vmem:[#allocation2 + $0x2a0] sm:$0xff] %v482
    %499 = vst [vmem:[#allocation2 + $0x2a8] sm:$0xff] %v483
    %500 = vst [vmem:[#allocation2 + $0x2b0] sm:$0xff] %v484
    %501 = vst [vmem:[#allocation2 + $0x2b8] sm:$0xff] %v485
    %502 = vrot.lane.b32.xlu0 %v46, 57
    %v503 = vpop.permute.xlu0 %502
    %504 = vrot.lane.b32.xlu0 %v47, 57
    %v505 = vpop.permute.xlu0 %504
    %506 = vrot.lane.b32.xlu0 %v48, 57
    %v507 = vpop.permute.xlu0 %506
    %508 = vrot.lane.b32.xlu0 %v49, 57
    %v509 = vpop.permute.xlu0 %508
    %510 = vrot.lane.b32.xlu0 %v50, 57
    %v511 = vpop.permute.xlu0 %510
    %512 = vrot.lane.b32.xlu0 %v51, 57
    %v513 = vpop.permute.xlu0 %512
    %514 = vrot.lane.b32.xlu0 %v52, 57
    %v515 = vpop.permute.xlu0 %514
    %516 = vrot.lane.b32.xlu0 %v53, 57
    %v517 = vpop.permute.xlu0 %516
    %518 = vrot.lane.b32.xlu0 %v62, 57
    %v519 = vpop.permute.xlu0 %518
    %vm520 = vcmask 465920
    %v521 = vsel %vm520, %v503, %v505
    %v522 = vsel %vm520, %v505, %v507
    %v523 = vsel %vm520, %v507, %v509
    %v524 = vsel %vm520, %v509, %v511
    %v525 = vsel %vm520, %v511, %v513
    %v526 = vsel %vm520, %v513, %v515
    %v527 = vsel %vm520, %v515, %v517
    %v528 = vsel %vm520, %v517, %v519
    %537 = vst [vmem:[#allocation2 + $0x2c0] sm:$0xff] %v521
    %538 = vst [vmem:[#allocation2 + $0x2c8] sm:$0xff] %v522
    %539 = vst [vmem:[#allocation2 + $0x2d0] sm:$0xff] %v523
    %540 = vst [vmem:[#allocation2 + $0x2d8] sm:$0xff] %v524
    %541 = vst [vmem:[#allocation2 + $0x2e0] sm:$0xff] %v525
    %542 = vst [vmem:[#allocation2 + $0x2e8] sm:$0xff] %v526
    %543 = vst [vmem:[#allocation2 + $0x2f0] sm:$0xff] %v527
    %544 = vst [vmem:[#allocation2 + $0x2f8] sm:$0xff] %v528
    %545 = vrot.lane.b32.xlu0 %v46, 26
    %v546 = vpop.permute.xlu0 %545
    %547 = vrot.lane.b32.xlu0 %v47, 26
    %v548 = vpop.permute.xlu0 %547
    %549 = vrot.lane.b32.xlu0 %v48, 26
    %v550 = vpop.permute.xlu0 %549
    %551 = vrot.lane.b32.xlu0 %v49, 26
    %v552 = vpop.permute.xlu0 %551
    %553 = vrot.lane.b32.xlu0 %v50, 26
    %v554 = vpop.permute.xlu0 %553
    %555 = vrot.lane.b32.xlu0 %v51, 26
    %v556 = vpop.permute.xlu0 %555
    %557 = vrot.lane.b32.xlu0 %v52, 26
    %v558 = vpop.permute.xlu0 %557
    %559 = vrot.lane.b32.xlu0 %v53, 26
    %v560 = vpop.permute.xlu0 %559
    %561 = vrot.lane.b32.xlu0 %v62, 26
    %v562 = vpop.permute.xlu0 %561
    %vm563 = vcmask 211968
    %v564 = vsel %vm563, %v546, %v548
    %v565 = vsel %vm563, %v548, %v550
    %v566 = vsel %vm563, %v550, %v552
    %v567 = vsel %vm563, %v552, %v554
    %v568 = vsel %vm563, %v554, %v556
    %v569 = vsel %vm563, %v556, %v558
    %v570 = vsel %vm563, %v558, %v560
    %v571 = vsel %vm563, %v560, %v562
    %580 = vst [vmem:[#allocation2 + $0x300] sm:$0xff] %v564
    %581 = vst [vmem:[#allocation2 + $0x308] sm:$0xff] %v565
    %582 = vst [vmem:[#allocation2 + $0x310] sm:$0xff] %v566
    %583 = vst [vmem:[#allocation2 + $0x318] sm:$0xff] %v567
    %584 = vst [vmem:[#allocation2 + $0x320] sm:$0xff] %v568
    %585 = vst [vmem:[#allocation2 + $0x328] sm:$0xff] %v569
    %586 = vst [vmem:[#allocation2 + $0x330] sm:$0xff] %v570
    %587 = vst [vmem:[#allocation2 + $0x338] sm:$0xff] %v571
    %588 = vrot.lane.b32.xlu0 %v46, 25
    %v589 = vpop.permute.xlu0 %588
    %590 = vrot.lane.b32.xlu0 %v47, 25
    %v591 = vpop.permute.xlu0 %590
    %592 = vrot.lane.b32.xlu0 %v48, 25
    %v593 = vpop.permute.xlu0 %592
    %594 = vrot.lane.b32.xlu0 %v49, 25
    %v595 = vpop.permute.xlu0 %594
    %596 = vrot.lane.b32.xlu0 %v50, 25
    %v597 = vpop.permute.xlu0 %596
    %598 = vrot.lane.b32.xlu0 %v51, 25
    %v599 = vpop.permute.xlu0 %598
    %600 = vrot.lane.b32.xlu0 %v52, 25
    %v601 = vpop.permute.xlu0 %600
    %602 = vrot.lane.b32.xlu0 %v53, 25
    %v603 = vpop.permute.xlu0 %602
    %604 = vrot.lane.b32.xlu0 %v62, 25
    %v605 = vpop.permute.xlu0 %604
    %vm606 = vcmask 203776
    %v607 = vsel %vm606, %v589, %v591
    %v608 = vsel %vm606, %v591, %v593
    %v609 = vsel %vm606, %v593, %v595
    %v610 = vsel %vm606, %v595, %v597
    %v611 = vsel %vm606, %v597, %v599
    %v612 = vsel %vm606, %v599, %v601
    %v613 = vsel %vm606, %v601, %v603
    %v614 = vsel %vm606, %v603, %v605
    %623 = vst [vmem:[#allocation2 + $0x340] sm:$0xff] %v607
    %624 = vst [vmem:[#allocation2 + $0x348] sm:$0xff] %v608
    %625 = vst [vmem:[#allocation2 + $0x350] sm:$0xff] %v609
    %626 = vst [vmem:[#allocation2 + $0x358] sm:$0xff] %v610
    %627 = vst [vmem:[#allocation2 + $0x360] sm:$0xff] %v611
    %628 = vst [vmem:[#allocation2 + $0x368] sm:$0xff] %v612
    %629 = vst [vmem:[#allocation2 + $0x370] sm:$0xff] %v613
    %630 = vst [vmem:[#allocation2 + $0x378] sm:$0xff] %v614
    %631 = vrot.lane.b32.xlu0 %v46, 24
    %v632 = vpop.permute.xlu0 %631
    %633 = vrot.lane.b32.xlu0 %v47, 24
    %v634 = vpop.permute.xlu0 %633
    %635 = vrot.lane.b32.xlu0 %v48, 24
    %v636 = vpop.permute.xlu0 %635
    %637 = vrot.lane.b32.xlu0 %v49, 24
    %v638 = vpop.permute.xlu0 %637
    %639 = vrot.lane.b32.xlu0 %v50, 24
    %v640 = vpop.permute.xlu0 %639
    %641 = vrot.lane.b32.xlu0 %v51, 24
    %v642 = vpop.permute.xlu0 %641
    %643 = vrot.lane.b32.xlu0 %v52, 24
    %v644 = vpop.permute.xlu0 %643
    %645 = vrot.lane.b32.xlu0 %v53, 24
    %v646 = vpop.permute.xlu0 %645
    %647 = vrot.lane.b32.xlu0 %v62, 24
    %v648 = vpop.permute.xlu0 %647
    %vm649 = vcmask 195584
    %v650 = vsel %vm649, %v632, %v634
    %v651 = vsel %vm649, %v634, %v636
    %v652 = vsel %vm649, %v636, %v638
    %v653 = vsel %vm649, %v638, %v640
    %v654 = vsel %vm649, %v640, %v642
    %v655 = vsel %vm649, %v642, %v644
    %v656 = vsel %vm649, %v644, %v646
    %v657 = vsel %vm649, %v646, %v648
    %666 = vst [vmem:[#allocation2 + $0x380] sm:$0xff] %v650
    %667 = vst [vmem:[#allocation2 + $0x388] sm:$0xff] %v651
    %668 = vst [vmem:[#allocation2 + $0x390] sm:$0xff] %v652
    %669 = vst [vmem:[#allocation2 + $0x398] sm:$0xff] %v653
    %670 = vst [vmem:[#allocation2 + $0x3a0] sm:$0xff] %v654
    %671 = vst [vmem:[#allocation2 + $0x3a8] sm:$0xff] %v655
    %672 = vst [vmem:[#allocation2 + $0x3b0] sm:$0xff] %v656
    %673 = vst [vmem:[#allocation2 + $0x3b8] sm:$0xff] %v657
    %674 = vrot.lane.b32.xlu0 %v46, 23
    %v675 = vpop.permute.xlu0 %674
    %676 = vrot.lane.b32.xlu0 %v47, 23
    %v677 = vpop.permute.xlu0 %676
    %678 = vrot.lane.b32.xlu0 %v48, 23
    %v679 = vpop.permute.xlu0 %678
    %680 = vrot.lane.b32.xlu0 %v49, 23
    %v681 = vpop.permute.xlu0 %680
    %682 = vrot.lane.b32.xlu0 %v50, 23
    %v683 = vpop.permute.xlu0 %682
    %684 = vrot.lane.b32.xlu0 %v51, 23
    %v685 = vpop.permute.xlu0 %684
    %686 = vrot.lane.b32.xlu0 %v52, 23
    %v687 = vpop.permute.xlu0 %686
    %688 = vrot.lane.b32.xlu0 %v53, 23
    %v689 = vpop.permute.xlu0 %688
    %690 = vrot.lane.b32.xlu0 %v62, 23
    %v691 = vpop.permute.xlu0 %690
    %vm692 = vcmask 187392
    %v693 = vsel %vm692, %v675, %v677
    %v694 = vsel %vm692, %v677, %v679
    %v695 = vsel %vm692, %v679, %v681
    %v696 = vsel %vm692, %v681, %v683
    %v697 = vsel %vm692, %v683, %v685
    %v698 = vsel %vm692, %v685, %v687
    %v699 = vsel %vm692, %v687, %v689
    %v700 = vsel %vm692, %v689, %v691
    %709 = vst [vmem:[#allocation2 + $0x3c0] sm:$0xff] %v693
    %710 = vst [vmem:[#allocation2 + $0x3c8] sm:$0xff] %v694
    %711 = vst [vmem:[#allocation2 + $0x3d0] sm:$0xff] %v695
    %712 = vst [vmem:[#allocation2 + $0x3d8] sm:$0xff] %v696
    %713 = vst [vmem:[#allocation2 + $0x3e0] sm:$0xff] %v697
    %714 = vst [vmem:[#allocation2 + $0x3e8] sm:$0xff] %v698
    %715 = vst [vmem:[#allocation2 + $0x3f0] sm:$0xff] %v699
    %716 = vst [vmem:[#allocation2 + $0x3f8] sm:$0xff] %v700
    %v717 = vld [vmem:[%s1] sm:$0x3f]
    %v718 = vld [vmem:[#allocation2] sm:$0xff]
    %v719 = vld [vmem:[#allocation2 + $0x8] sm:$0xff]
    %v720 = vld [vmem:[#allocation2 + $0x10] sm:$0xff]
    %v721 = vld [vmem:[#allocation2 + $0x18] sm:$0xff]
    %v722 = vld [vmem:[#allocation2 + $0x20] sm:$0xff]
    %v723 = vld [vmem:[#allocation2 + $0x28] sm:$0xff]
    %v724 = vld [vmem:[#allocation2 + $0x30] sm:$0xff]
    %v725 = vld [vmem:[#allocation2 + $0x38] sm:$0xff]
    %v726 = vld [vmem:[#allocation2 + $0x40] sm:$0xff]
    %v727 = vld [vmem:[#allocation2 + $0x48] sm:$0xff]
    %v728 = vld [vmem:[#allocation2 + $0x50] sm:$0xff]
    %v729 = vld [vmem:[#allocation2 + $0x58] sm:$0xff]
    %v730 = vld [vmem:[#allocation2 + $0x60] sm:$0xff]
    %v731 = vld [vmem:[#allocation2 + $0x68] sm:$0xff]
    %v732 = vld [vmem:[#allocation2 + $0x70] sm:$0xff]
    %v733 = vld [vmem:[#allocation2 + $0x78] sm:$0xff]
    %v734 = vld [vmem:[#allocation2 + $0x80] sm:$0xff]
    %v735 = vld [vmem:[#allocation2 + $0x88] sm:$0xff]
    %v736 = vld [vmem:[#allocation2 + $0x90] sm:$0xff]
    %v737 = vld [vmem:[#allocation2 + $0x98] sm:$0xff]
    %v738 = vld [vmem:[#allocation2 + $0xa0] sm:$0xff]
    %v739 = vld [vmem:[#allocation2 + $0xa8] sm:$0xff]
    %v740 = vld [vmem:[#allocation2 + $0xb0] sm:$0xff]
    %v741 = vld [vmem:[#allocation2 + $0xb8] sm:$0xff]
    %v742 = vld [vmem:[#allocation2 + $0xc0] sm:$0xff]
    %v743 = vld [vmem:[#allocation2 + $0xc8] sm:$0xff]
    %v744 = vld [vmem:[#allocation2 + $0xd0] sm:$0xff]
    %v745 = vld [vmem:[#allocation2 + $0xd8] sm:$0xff]
    %v746 = vld [vmem:[#allocation2 + $0xe0] sm:$0xff]
    %v747 = vld [vmem:[#allocation2 + $0xe8] sm:$0xff]
    %v748 = vld [vmem:[#allocation2 + $0xf0] sm:$0xff]
    %v749 = vld [vmem:[#allocation2 + $0xf8] sm:$0xff]
    %v750 = vld [vmem:[#allocation2 + $0x100] sm:$0xff]
    %v751 = vld [vmem:[#allocation2 + $0x108] sm:$0xff]
    %v752 = vld [vmem:[#allocation2 + $0x110] sm:$0xff]
    %v753 = vld [vmem:[#allocation2 + $0x118] sm:$0xff]
    %v754 = vld [vmem:[#allocation2 + $0x120] sm:$0xff]
    %v755 = vld [vmem:[#allocation2 + $0x128] sm:$0xff]
    %v756 = vld [vmem:[#allocation2 + $0x130] sm:$0xff]
    %v757 = vld [vmem:[#allocation2 + $0x138] sm:$0xff]
    %v758 = vld [vmem:[#allocation2 + $0x140] sm:$0xff]
    %v759 = vld [vmem:[#allocation2 + $0x148] sm:$0xff]
    %v760 = vld [vmem:[#allocation2 + $0x150] sm:$0xff]
    %v761 = vld [vmem:[#allocation2 + $0x158] sm:$0xff]
    %v762 = vld [vmem:[#allocation2 + $0x160] sm:$0xff]
    %v763 = vld [vmem:[#allocation2 + $0x168] sm:$0xff]
    %v764 = vld [vmem:[#allocation2 + $0x170] sm:$0xff]
    %v765 = vld [vmem:[#allocation2 + $0x178] sm:$0xff]
    %v766 = vld [vmem:[#allocation2 + $0x180] sm:$0xff]
    %v767 = vld [vmem:[#allocation2 + $0x188] sm:$0xff]
    %v768 = vld [vmem:[#allocation2 + $0x190] sm:$0xff]
    %v769 = vld [vmem:[#allocation2 + $0x198] sm:$0xff]
    %v770 = vld [vmem:[#allocation2 + $0x1a0] sm:$0xff]
    %v771 = vld [vmem:[#allocation2 + $0x1a8] sm:$0xff]
    %v772 = vld [vmem:[#allocation2 + $0x1b0] sm:$0xff]
    %v773 = vld [vmem:[#allocation2 + $0x1b8] sm:$0xff]
    %v774 = vld [vmem:[#allocation2 + $0x1c0] sm:$0xff]
    %v775 = vld [vmem:[#allocation2 + $0x1c8] sm:$0xff]
    %v776 = vld [vmem:[#allocation2 + $0x1d0] sm:$0xff]
    %v777 = vld [vmem:[#allocation2 + $0x1d8] sm:$0xff]
    %v778 = vld [vmem:[#allocation2 + $0x1e0] sm:$0xff]
    %v779 = vld [vmem:[#allocation2 + $0x1e8] sm:$0xff]
    %v780 = vld [vmem:[#allocation2 + $0x1f0] sm:$0xff]
    %v781 = vld [vmem:[#allocation2 + $0x1f8] sm:$0xff]
    %v782 = vld [vmem:[#allocation2 + $0x200] sm:$0xff]
    %v783 = vld [vmem:[#allocation2 + $0x208] sm:$0xff]
    %v784 = vld [vmem:[#allocation2 + $0x210] sm:$0xff]
    %v785 = vld [vmem:[#allocation2 + $0x218] sm:$0xff]
    %v786 = vld [vmem:[#allocation2 + $0x220] sm:$0xff]
    %v787 = vld [vmem:[#allocation2 + $0x228] sm:$0xff]
    %v788 = vld [vmem:[#allocation2 + $0x230] sm:$0xff]
    %v789 = vld [vmem:[#allocation2 + $0x238] sm:$0xff]
    %v790 = vld [vmem:[#allocation2 + $0x240] sm:$0xff]
    %v791 = vld [vmem:[#allocation2 + $0x248] sm:$0xff]
    %v792 = vld [vmem:[#allocation2 + $0x250] sm:$0xff]
    %v793 = vld [vmem:[#allocation2 + $0x258] sm:$0xff]
    %v794 = vld [vmem:[#allocation2 + $0x260] sm:$0xff]
    %v795 = vld [vmem:[#allocation2 + $0x268] sm:$0xff]
    %v796 = vld [vmem:[#allocation2 + $0x270] sm:$0xff]
    %v797 = vld [vmem:[#allocation2 + $0x278] sm:$0xff]
    %v798 = vld [vmem:[#allocation2 + $0x280] sm:$0xff]
    %v799 = vld [vmem:[#allocation2 + $0x288] sm:$0xff]
    %v800 = vld [vmem:[#allocation2 + $0x290] sm:$0xff]
    %v801 = vld [vmem:[#allocation2 + $0x298] sm:$0xff]
    %v802 = vld [vmem:[#allocation2 + $0x2a0] sm:$0xff]
    %v803 = vld [vmem:[#allocation2 + $0x2a8] sm:$0xff]
    %v804 = vld [vmem:[#allocation2 + $0x2b0] sm:$0xff]
    %v805 = vld [vmem:[#allocation2 + $0x2b8] sm:$0xff]
    %v806 = vld [vmem:[#allocation2 + $0x2c0] sm:$0xff]
    %v807 = vld [vmem:[#allocation2 + $0x2c8] sm:$0xff]
    %v808 = vld [vmem:[#allocation2 + $0x2d0] sm:$0xff]
    %v809 = vld [vmem:[#allocation2 + $0x2d8] sm:$0xff]
    %v810 = vld [vmem:[#allocation2 + $0x2e0] sm:$0xff]
    %v811 = vld [vmem:[#allocation2 + $0x2e8] sm:$0xff]
    %v812 = vld [vmem:[#allocation2 + $0x2f0] sm:$0xff]
    %v813 = vld [vmem:[#allocation2 + $0x2f8] sm:$0xff]
    %v814 = vld [vmem:[#allocation2 + $0x300] sm:$0xff]
    %v815 = vld [vmem:[#allocation2 + $0x308] sm:$0xff]
    %v816 = vld [vmem:[#allocation2 + $0x310] sm:$0xff]
    %v817 = vld [vmem:[#allocation2 + $0x318] sm:$0xff]
    %v818 = vld [vmem:[#allocation2 + $0x320] sm:$0xff]
    %v819 = vld [vmem:[#allocation2 + $0x328] sm:$0xff]
    %v820 = vld [vmem:[#allocation2 + $0x330] sm:$0xff]
    %v821 = vld [vmem:[#allocation2 + $0x338] sm:$0xff]
    %v822 = vld [vmem:[#allocation2 + $0x340] sm:$0xff]
    %v823 = vld [vmem:[#allocation2 + $0x348] sm:$0xff]
    %v824 = vld [vmem:[#allocation2 + $0x350] sm:$0xff]
    %v825 = vld [vmem:[#allocation2 + $0x358] sm:$0xff]
    %v826 = vld [vmem:[#allocation2 + $0x360] sm:$0xff]
    %v827 = vld [vmem:[#allocation2 + $0x368] sm:$0xff]
    %v828 = vld [vmem:[#allocation2 + $0x370] sm:$0xff]
    %v829 = vld [vmem:[#allocation2 + $0x378] sm:$0xff]
    %v830 = vld [vmem:[#allocation2 + $0x380] sm:$0xff]
    %v831 = vld [vmem:[#allocation2 + $0x388] sm:$0xff]
    %v832 = vld [vmem:[#allocation2 + $0x390] sm:$0xff]
    %v833 = vld [vmem:[#allocation2 + $0x398] sm:$0xff]
    %v834 = vld [vmem:[#allocation2 + $0x3a0] sm:$0xff]
    %v835 = vld [vmem:[#allocation2 + $0x3a8] sm:$0xff]
    %v836 = vld [vmem:[#allocation2 + $0x3b0] sm:$0xff]
    %v837 = vld [vmem:[#allocation2 + $0x3b8] sm:$0xff]
    %v838 = vld [vmem:[#allocation2 + $0x3c0] sm:$0xff]
    %v839 = vld [vmem:[#allocation2 + $0x3c8] sm:$0xff]
    %v840 = vld [vmem:[#allocation2 + $0x3d0] sm:$0xff]
    %v841 = vld [vmem:[#allocation2 + $0x3d8] sm:$0xff]
    %v842 = vld [vmem:[#allocation2 + $0x3e0] sm:$0xff]
    %v843 = vld [vmem:[#allocation2 + $0x3e8] sm:$0xff]
    %v844 = vld [vmem:[#allocation2 + $0x3f0] sm:$0xff]
    %v845 = vld [vmem:[#allocation2 + $0x3f8] sm:$0xff]
    %v846 = vld [vmem:[%s2] sm:$0x3f]
    %848 = vset.pattern.permute.xlu0 0
    %849 = vperm.xlu0 %848, %v846
    %v850 = vpop.permute.xlu0 %849
    %852 = vmatprep.subr.mxu0 %v839
    %853 = vmatpush1.msra.mxu0 %v838
    %854 = vmatprep.subr.mxu0 %v831
    %855 = vmatpush1.msra.mxu0 %v830
    %856 = vmatprep.subr.mxu0 %v823
    %857 = vmatpush1.msra.mxu0 %v822
    %858 = vmatprep.subr.mxu0 %v815
    %859 = vmatpush1.msra.mxu0 %v814
    %860 = vmatprep.subr.mxu0 %v807
    %861 = vmatpush1.msra.mxu0 %v806
    %862 = vmatprep.subr.mxu0 %v799
    %863 = vmatpush1.msra.mxu0 %v798
    %864 = vmatprep.subr.mxu0 %v791
    %865 = vmatpush1.msra.mxu0 %v790
    %866 = vmatprep.subr.mxu0 %v783
    %867 = vmatpush1.msra.mxu0 %v782
    %868 = vmatprep.subr.mxu0 %v775
    %869 = vmatpush1.msra.mxu0 %v774
    %870 = vmatprep.subr.mxu0 %v767
    %871 = vmatpush1.msra.mxu0 %v766
    %872 = vmatprep.subr.mxu0 %v759
    %873 = vmatpush1.msra.mxu0 %v758
    %874 = vmatprep.subr.mxu0 %v751
    %875 = vmatpush1.msra.mxu0 %v750
    %876 = vmatprep.subr.mxu0 %v743
    %877 = vmatpush1.msra.mxu0 %v742
    %878 = vmatprep.subr.mxu0 %v735
    %879 = vmatpush1.msra.mxu0 %v734
    %880 = vmatprep.subr.mxu0 %v727
    %881 = vmatpush1.msra.mxu0 %v726
    %882 = vmatprep.subr.mxu0 %v719
    %883 = vmatpush1.msra.mxu0 %v718
    %884 = vmatprep.subr.mxu0 0.0
    %885 = vmatpush2.msra.mxu0 0.0
    %886 = vmatprep.subr.mxu0 0.0
    %887 = vmatpush2.msra.mxu0 0.0
    %888 = vmatprep.subr.mxu0 0.0
    %889 = vmatpush2.msra.mxu0 0.0
    %890 = vmatprep.subr.mxu0 0.0
    %891 = vmatpush2.msra.mxu0 0.0
    %892 = vmatprep.subr.mxu0 0.0
    %893 = vmatpush2.msra.mxu0 0.0
    %894 = vmatprep.subr.mxu0 0.0
    %895 = vmatpush2.msra.mxu0 0.0
    %896 = vmatprep.subr.mxu0 0.0
    %897 = vmatpush2.msra.mxu0 0.0
    %898 = vmatprep.subr.mxu0 0.0
    %899 = vmatpush2.msra.mxu0 0.0
    %900 = vmatprep.subr.mxu0 0.0
    %901 = vmatpush2.msra.mxu0 0.0
    %902 = vmatprep.subr.mxu0 0.0
    %903 = vmatpush2.msra.mxu0 0.0
    %904 = vmatprep.subr.mxu0 0.0
    %905 = vmatpush2.msra.mxu0 0.0
    %906 = vmatprep.subr.mxu0 0.0
    %907 = vmatpush2.msra.mxu0 0.0
    %908 = vmatprep.subr.mxu0 0.0
    %909 = vmatpush2.msra.mxu0 0.0
    %910 = vmatprep.subr.mxu0 0.0
    %911 = vmatpush2.msra.mxu0 0.0
    %912 = vmatprep.subr.mxu0 0.0
    %913 = vmatpush2.msra.mxu0 0.0
    %914 = vmatprep.subr.mxu0 0.0
    %915 = vmatpush2.msra.mxu0 0.0
    %916 = vmatprep.mubr.f32.mxu0 0.0
    %917 = vmatmul.mubr.f32.gmra.mxu0 %v717
    %v918 = vpop.f32.mrf.mxu0
    %v919 = vadd.f32 %v850, %v918
    %v920 = vpop.f32.mrf.mxu0
    %v921 = vadd.f32 %v850, %v920
    %922 = vdwg.mxu0
    %923 = vmatprep.subr.mxu0 %v841
    %924 = vmatpush1.msra.mxu0 %v840
    %925 = vmatprep.subr.mxu0 %v833
    %926 = vmatpush1.msra.mxu0 %v832
    %927 = vmatprep.subr.mxu0 %v825
    %928 = vmatpush1.msra.mxu0 %v824
    %929 = vmatprep.subr.mxu0 %v817
    %930 = vmatpush1.msra.mxu0 %v816
    %931 = vmatprep.subr.mxu0 %v809
    %932 = vmatpush1.msra.mxu0 %v808
    %933 = vmatprep.subr.mxu0 %v801
    %934 = vmatpush1.msra.mxu0 %v800
    %935 = vmatprep.subr.mxu0 %v793
    %936 = vmatpush1.msra.mxu0 %v792
    %937 = vmatprep.subr.mxu0 %v785
    %938 = vmatpush1.msra.mxu0 %v784
    %939 = vmatprep.subr.mxu0 %v777
    %940 = vmatpush1.msra.mxu0 %v776
    %941 = vmatprep.subr.mxu0 %v769
    %942 = vmatpush1.msra.mxu0 %v768
    %943 = vmatprep.subr.mxu0 %v761
    %944 = vmatpush1.msra.mxu0 %v760
    %945 = vmatprep.subr.mxu0 %v753
    %946 = vmatpush1.msra.mxu0 %v752
    %947 = vmatprep.subr.mxu0 %v745
    %948 = vmatpush1.msra.mxu0 %v744
    %949 = vmatprep.subr.mxu0 %v737
    %950 = vmatpush1.msra.mxu0 %v736
    %951 = vmatprep.subr.mxu0 %v729
    %952 = vmatpush1.msra.mxu0 %v728
    %953 = vmatprep.subr.mxu0 %v721
    %954 = vmatpush1.msra.mxu0 %v720
    %955 = vmatprep.subr.mxu0 0.0
    %956 = vmatpush2.msra.mxu0 0.0
    %957 = vmatprep.subr.mxu0 0.0
    %958 = vmatpush2.msra.mxu0 0.0
    %959 = vmatprep.subr.mxu0 0.0
    %960 = vmatpush2.msra.mxu0 0.0
    %961 = vmatprep.subr.mxu0 0.0
    %962 = vmatpush2.msra.mxu0 0.0
    %963 = vmatprep.subr.mxu0 0.0
    %964 = vmatpush2.msra.mxu0 0.0
    %965 = vmatprep.subr.mxu0 0.0
    %966 = vmatpush2.msra.mxu0 0.0
    %967 = vmatprep.subr.mxu0 0.0
    %968 = vmatpush2.msra.mxu0 0.0
    %969 = vmatprep.subr.mxu0 0.0
    %970 = vmatpush2.msra.mxu0 0.0
    %971 = vmatprep.subr.mxu0 0.0
    %972 = vmatpush2.msra.mxu0 0.0
    %973 = vmatprep.subr.mxu0 0.0
    %974 = vmatpush2.msra.mxu0 0.0
    %975 = vmatprep.subr.mxu0 0.0
    %976 = vmatpush2.msra.mxu0 0.0
    %977 = vmatprep.subr.mxu0 0.0
    %978 = vmatpush2.msra.mxu0 0.0
    %979 = vmatprep.subr.mxu0 0.0
    %980 = vmatpush2.msra.mxu0 0.0
    %981 = vmatprep.subr.mxu0 0.0
    %982 = vmatpush2.msra.mxu0 0.0
    %983 = vmatprep.subr.mxu0 0.0
    %984 = vmatpush2.msra.mxu0 0.0
    %985 = vmatprep.subr.mxu0 0.0
    %986 = vmatpush2.msra.mxu0 0.0
    %987 = vmatprep.mubr.f32.mxu0 0.0
    %988 = vmatmul.mubr.f32.gmra.mxu0 %v717
    %v989 = vpop.f32.mrf.mxu0
    %v990 = vadd.f32 %v850, %v989
    %v991 = vpop.f32.mrf.mxu0
    %v992 = vadd.f32 %v850, %v991
    %993 = vdwg.mxu0
    %994 = vmatprep.subr.mxu0 %v843
    %995 = vmatpush1.msra.mxu0 %v842
    %996 = vmatprep.subr.mxu0 %v835
    %997 = vmatpush1.msra.mxu0 %v834
    %998 = vmatprep.subr.mxu0 %v827
    %999 = vmatpush1.msra.mxu0 %v826
    %1000 = vmatprep.subr.mxu0 %v819
    %1001 = vmatpush1.msra.mxu0 %v818
    %1002 = vmatprep.subr.mxu0 %v811
    %1003 = vmatpush1.msra.mxu0 %v810
    %1004 = vmatprep.subr.mxu0 %v803
    %1005 = vmatpush1.msra.mxu0 %v802
    %1006 = vmatprep.subr.mxu0 %v795
    %1007 = vmatpush1.msra.mxu0 %v794
    %1008 = vmatprep.subr.mxu0 %v787
    %1009 = vmatpush1.msra.mxu0 %v786
    %1010 = vmatprep.subr.mxu0 %v779
    %1011 = vmatpush1.msra.mxu0 %v778
    %1012 = vmatprep.subr.mxu0 %v771
    %1013 = vmatpush1.msra.mxu0 %v770
    %1014 = vmatprep.subr.mxu0 %v763
    %1015 = vmatpush1.msra.mxu0 %v762
    %1016 = vmatprep.subr.mxu0 %v755
    %1017 = vmatpush1.msra.mxu0 %v754
    %1018 = vmatprep.subr.mxu0 %v747
    %1019 = vmatpush1.msra.mxu0 %v746
    %1020 = vmatprep.subr.mxu0 %v739
    %1021 = vmatpush1.msra.mxu0 %v738
    %1022 = vmatprep.subr.mxu0 %v731
    %1023 = vmatpush1.msra.mxu0 %v730
    %1024 = vmatprep.subr.mxu0 %v723
    %1025 = vmatpush1.msra.mxu0 %v722
    %1026 = vmatprep.subr.mxu0 0.0
    %1027 = vmatpush2.msra.mxu0 0.0
    %1028 = vmatprep.subr.mxu0 0.0
    %1029 = vmatpush2.msra.mxu0 0.0
    %1030 = vmatprep.subr.mxu0 0.0
    %1031 = vmatpush2.msra.mxu0 0.0
    %1032 = vmatprep.subr.mxu0 0.0
    %1033 = vmatpush2.msra.mxu0 0.0
    %1034 = vmatprep.subr.mxu0 0.0
    %1035 = vmatpush2.msra.mxu0 0.0
    %1036 = vmatprep.subr.mxu0 0.0
    %1037 = vmatpush2.msra.mxu0 0.0
    %1038 = vmatprep.subr.mxu0 0.0
    %1039 = vmatpush2.msra.mxu0 0.0
    %1040 = vmatprep.subr.mxu0 0.0
    %1041 = vmatpush2.msra.mxu0 0.0
    %1042 = vmatprep.subr.mxu0 0.0
    %1043 = vmatpush2.msra.mxu0 0.0
    %1044 = vmatprep.subr.mxu0 0.0
    %1045 = vmatpush2.msra.mxu0 0.0
    %1046 = vmatprep.subr.mxu0 0.0
    %1047 = vmatpush2.msra.mxu0 0.0
    %1048 = vmatprep.subr.mxu0 0.0
    %1049 = vmatpush2.msra.mxu0 0.0
    %1050 = vmatprep.subr.mxu0 0.0
    %1051 = vmatpush2.msra.mxu0 0.0
    %1052 = vmatprep.subr.mxu0 0.0
    %1053 = vmatpush2.msra.mxu0 0.0
    %1054 = vmatprep.subr.mxu0 0.0
    %1055 = vmatpush2.msra.mxu0 0.0
    %1056 = vmatprep.subr.mxu0 0.0
    %1057 = vmatpush2.msra.mxu0 0.0
    %1058 = vmatprep.mubr.f32.mxu0 0.0
    %1059 = vmatmul.mubr.f32.gmra.mxu0 %v717
    %v1060 = vpop.f32.mrf.mxu0
    %v1061 = vadd.f32 %v850, %v1060
    %v1062 = vpop.f32.mrf.mxu0
    %v1063 = vadd.f32 %v850, %v1062
    %1064 = vdwg.mxu0
    %1065 = vmatprep.subr.mxu0 %v845
    %1066 = vmatpush1.msra.mxu0 %v844
    %1067 = vmatprep.subr.mxu0 %v837
    %1068 = vmatpush1.msra.mxu0 %v836
    %1069 = vmatprep.subr.mxu0 %v829
    %1070 = vmatpush1.msra.mxu0 %v828
    %1071 = vmatprep.subr.mxu0 %v821
    %1072 = vmatpush1.msra.mxu0 %v820
    %1073 = vmatprep.subr.mxu0 %v813
    %1074 = vmatpush1.msra.mxu0 %v812
    %1075 = vmatprep.subr.mxu0 %v805
    %1076 = vmatpush1.msra.mxu0 %v804
    %1077 = vmatprep.subr.mxu0 %v797
    %1078 = vmatpush1.msra.mxu0 %v796
    %1079 = vmatprep.subr.mxu0 %v789
    %1080 = vmatpush1.msra.mxu0 %v788
    %1081 = vmatprep.subr.mxu0 %v781
    %1082 = vmatpush1.msra.mxu0 %v780
    %1083 = vmatprep.subr.mxu0 %v773
    %1084 = vmatpush1.msra.mxu0 %v772
    %1085 = vmatprep.subr.mxu0 %v765
    %1086 = vmatpush1.msra.mxu0 %v764
    %1087 = vmatprep.subr.mxu0 %v757
    %1088 = vmatpush1.msra.mxu0 %v756
    %1089 = vmatprep.subr.mxu0 %v749
    %1090 = vmatpush1.msra.mxu0 %v748
    %1091 = vmatprep.subr.mxu0 %v741
    %1092 = vmatpush1.msra.mxu0 %v740
    %1093 = vmatprep.subr.mxu0 %v733
    %1094 = vmatpush1.msra.mxu0 %v732
    %1095 = vmatprep.subr.mxu0 %v725
    %1096 = vmatpush1.msra.mxu0 %v724
    %1097 = vmatprep.subr.mxu0 0.0
    %1098 = vmatpush2.msra.mxu0 0.0
    %1099 = vmatprep.subr.mxu0 0.0
    %1100 = vmatpush2.msra.mxu0 0.0
    %1101 = vmatprep.subr.mxu0 0.0
    %1102 = vmatpush2.msra.mxu0 0.0
    %1103 = vmatprep.subr.mxu0 0.0
    %1104 = vmatpush2.msra.mxu0 0.0
    %1105 = vmatprep.subr.mxu0 0.0
    %1106 = vmatpush2.msra.mxu0 0.0
    %1107 = vmatprep.subr.mxu0 0.0
    %1108 = vmatpush2.msra.mxu0 0.0
    %1109 = vmatprep.subr.mxu0 0.0
    %1110 = vmatpush2.msra.mxu0 0.0
    %1111 = vmatprep.subr.mxu0 0.0
    %1112 = vmatpush2.msra.mxu0 0.0
    %1113 = vmatprep.subr.mxu0 0.0
    %1114 = vmatpush2.msra.mxu0 0.0
    %1115 = vmatprep.subr.mxu0 0.0
    %1116 = vmatpush2.msra.mxu0 0.0
    %1117 = vmatprep.subr.mxu0 0.0
    %1118 = vmatpush2.msra.mxu0 0.0
    %1119 = vmatprep.subr.mxu0 0.0
    %1120 = vmatpush2.msra.mxu0 0.0
    %1121 = vmatprep.subr.mxu0 0.0
    %1122 = vmatpush2.msra.mxu0 0.0
    %1123 = vmatprep.subr.mxu0 0.0
    %1124 = vmatpush2.msra.mxu0 0.0
    %1125 = vmatprep.subr.mxu0 0.0
    %1126 = vmatpush2.msra.mxu0 0.0
    %1127 = vmatprep.subr.mxu0 0.0
    %1128 = vmatpush2.msra.mxu0 0.0
    %1129 = vmatprep.mubr.f32.mxu0 0.0
    %1130 = vmatmul.mubr.f32.gmra.mxu0 %v717
    %v1131 = vpop.f32.mrf.mxu0
    %v1132 = vadd.f32 %v850, %v1131
    %v1133 = vpop.f32.mrf.mxu0
    %v1134 = vadd.f32 %v850, %v1133
    %1135 = vdwg.mxu0
    %v1136 = vmax.f32 %v919, 0.0
    %v1137 = vmax.f32 %v921, 0.0
    %v1138 = vmax.f32 %v990, 0.0
    %v1139 = vmax.f32 %v992, 0.0
    %v1140 = vmax.f32 %v1061, 0.0
    %v1141 = vmax.f32 %v1063, 0.0
    %v1142 = vmax.f32 %v1132, 0.0
    %v1143 = vmax.f32 %v1134, 0.0
    %1152 = vrot.lane.b32.xlu0 %v1136, 94
    %v1153 = vpop.permute.xlu0 %1152
    %1154 = vrot.lane.b32.xlu0 %v1137, 94
    %v1155 = vpop.permute.xlu0 %1154
    %1156 = vrot.lane.b32.xlu0 %v1138, 94
    %v1157 = vpop.permute.xlu0 %1156
    %1158 = vrot.lane.b32.xlu0 %v1139, 94
    %v1159 = vpop.permute.xlu0 %1158
    %1160 = vrot.lane.b32.xlu0 %v1140, 94
    %v1161 = vpop.permute.xlu0 %1160
    %1162 = vrot.lane.b32.xlu0 %v1141, 94
    %v1163 = vpop.permute.xlu0 %1162
    %1164 = vrot.lane.b32.xlu0 %v1142, 94
    %v1165 = vpop.permute.xlu0 %1164
    %1166 = vrot.lane.b32.xlu0 %v1143, 94
    %v1167 = vpop.permute.xlu0 %1166
    %v1168 = vsel %vm219, %v1153, %v1155
    %v1169 = vsel %vm219, %v1155, %v1157
    %v1170 = vsel %vm219, %v1157, %v1159
    %v1171 = vsel %vm219, %v1159, %v1161
    %v1172 = vsel %vm219, %v1161, %v1163
    %v1173 = vsel %vm219, %v1163, %v1165
    %v1174 = vsel %vm219, %v1165, %v1167
    %v1183 = vmax.f32 %v1136, %v1168
    %v1184 = vmax.f32 %v1137, %v1169
    %v1185 = vmax.f32 %v1138, %v1170
    %v1186 = vmax.f32 %v1139, %v1171
    %v1187 = vmax.f32 %v1140, %v1172
    %v1188 = vmax.f32 %v1141, %v1173
    %v1189 = vmax.f32 %v1142, %v1174
    %v1190 = vmax.f32 %v1143, %v1167
    %1191 = vrot.lane.b32.xlu0 %v1136, 60
    %v1192 = vpop.permute.xlu0 %1191
    %1193 = vrot.lane.b32.xlu0 %v1137, 60
    %v1194 = vpop.permute.xlu0 %1193
    %1195 = vrot.lane.b32.xlu0 %v1138, 60
    %v1196 = vpop.permute.xlu0 %1195
    %1197 = vrot.lane.b32.xlu0 %v1139, 60
    %v1198 = vpop.permute.xlu0 %1197
    %1199 = vrot.lane.b32.xlu0 %v1140, 60
    %v1200 = vpop.permute.xlu0 %1199
    %1201 = vrot.lane.b32.xlu0 %v1141, 60
    %v1202 = vpop.permute.xlu0 %1201
    %1203 = vrot.lane.b32.xlu0 %v1142, 60
    %v1204 = vpop.permute.xlu0 %1203
    %1205 = vrot.lane.b32.xlu0 %v1143, 60
    %v1206 = vpop.permute.xlu0 %1205
    %v1207 = vsel %vm391, %v1192, %v1194
    %v1208 = vsel %vm391, %v1194, %v1196
    %v1209 = vsel %vm391, %v1196, %v1198
    %v1210 = vsel %vm391, %v1198, %v1200
    %v1211 = vsel %vm391, %v1200, %v1202
    %v1212 = vsel %vm391, %v1202, %v1204
    %v1213 = vsel %vm391, %v1204, %v1206
    %v1222 = vmax.f32 %v1183, %v1207
    %v1223 = vmax.f32 %v1184, %v1208
    %v1224 = vmax.f32 %v1185, %v1209
    %v1225 = vmax.f32 %v1186, %v1210
    %v1226 = vmax.f32 %v1187, %v1211
    %v1227 = vmax.f32 %v1188, %v1212
    %v1228 = vmax.f32 %v1189, %v1213
    %v1229 = vmax.f32 %v1190, %v1206
    %1238 = vrot.lane.b32.xlu0 %v1222, 127
    %v1239 = vpop.permute.xlu0 %1238
    %1240 = vrot.lane.b32.xlu0 %v1223, 127
    %v1241 = vpop.permute.xlu0 %1240
    %1242 = vrot.lane.b32.xlu0 %v1224, 127
    %v1243 = vpop.permute.xlu0 %1242
    %1244 = vrot.lane.b32.xlu0 %v1225, 127
    %v1245 = vpop.permute.xlu0 %1244
    %1246 = vrot.lane.b32.xlu0 %v1226, 127
    %v1247 = vpop.permute.xlu0 %1246
    %1248 = vrot.lane.b32.xlu0 %v1227, 127
    %v1249 = vpop.permute.xlu0 %1248
    %1250 = vrot.lane.b32.xlu0 %v1228, 127
    %v1251 = vpop.permute.xlu0 %1250
    %1252 = vrot.lane.b32.xlu0 %v1229, 127
    %v1253 = vpop.permute.xlu0 %1252
    %v1254 = vsel %vm90, %v1239, %v1241
    %v1255 = vsel %vm90, %v1241, %v1243
    %v1256 = vsel %vm90, %v1243, %v1245
    %v1257 = vsel %vm90, %v1245, %v1247
    %v1258 = vsel %vm90, %v1247, %v1249
    %v1259 = vsel %vm90, %v1249, %v1251
    %v1260 = vsel %vm90, %v1251, %v1253
    %v1269 = vmax.f32 %v1222, %v1254
    %v1270 = vmax.f32 %v1223, %v1255
    %v1271 = vmax.f32 %v1224, %v1256
    %v1272 = vmax.f32 %v1225, %v1257
    %v1273 = vmax.f32 %v1226, %v1258
    %v1274 = vmax.f32 %v1227, %v1259
    %v1275 = vmax.f32 %v1228, %v1260
    %v1276 = vmax.f32 %v1229, %v1253
    %1277 = vrot.lane.b32.xlu0 %v1222, 126
    %v1278 = vpop.permute.xlu0 %1277
    %1279 = vrot.lane.b32.xlu0 %v1223, 126
    %v1280 = vpop.permute.xlu0 %1279
    %1281 = vrot.lane.b32.xlu0 %v1224, 126
    %v1282 = vpop.permute.xlu0 %1281
    %1283 = vrot.lane.b32.xlu0 %v1225, 126
    %v1284 = vpop.permute.xlu0 %1283
    %1285 = vrot.lane.b32.xlu0 %v1226, 126
    %v1286 = vpop.permute.xlu0 %1285
    %1287 = vrot.lane.b32.xlu0 %v1227, 126
    %v1288 = vpop.permute.xlu0 %1287
    %1289 = vrot.lane.b32.xlu0 %v1228, 126
    %v1290 = vpop.permute.xlu0 %1289
    %1291 = vrot.lane.b32.xlu0 %v1229, 126
    %v1292 = vpop.permute.xlu0 %1291
    %v1293 = vsel %vm133, %v1278, %v1280
    %v1294 = vsel %vm133, %v1280, %v1282
    %v1295 = vsel %vm133, %v1282, %v1284
    %v1296 = vsel %vm133, %v1284, %v1286
    %v1297 = vsel %vm133, %v1286, %v1288
    %v1298 = vsel %vm133, %v1288, %v1290
    %v1299 = vsel %vm133, %v1290, %v1292
    %v1308 = vmax.f32 %v1269, %v1293
    %v1309 = vmax.f32 %v1270, %v1294
    %v1310 = vmax.f32 %v1271, %v1295
    %v1311 = vmax.f32 %v1272, %v1296
    %v1312 = vmax.f32 %v1273, %v1297
    %v1313 = vmax.f32 %v1274, %v1298
    %v1314 = vmax.f32 %v1275, %v1299
    %v1315 = vmax.f32 %v1276, %v1292
    %v1316 = vld [vmem:[%s3] sm:$0xff]
    %v1317 = vld [vmem:[%s3 + $0x8] sm:$0xff]
    %v1318 = vld [vmem:[%s3 + $0x10] sm:$0xff]
    %v1319 = vld [vmem:[%s3 + $0x18] sm:$0xff]
    %v1320 = vld [vmem:[%s3 + $0x20] sm:$0xff]
    %v1321 = vld [vmem:[%s3 + $0x28] sm:$0xff]
    %v1322 = vld [vmem:[%s3 + $0x30] sm:$0xff]
    %v1323 = vld [vmem:[%s3 + $0x38] sm:$0xff]
    %v1324 = vld [vmem:[%s3 + $0x40] sm:$0xff]
    %v1325 = vld [vmem:[%s3 + $0x48] sm:$0xff]
    %v1326 = vld [vmem:[%s3 + $0x50] sm:$0xff]
    %v1327 = vld [vmem:[%s3 + $0x58] sm:$0xff]
    %v1328 = vld [vmem:[%s3 + $0x60] sm:$0xff]
    %v1329 = vld [vmem:[%s3 + $0x68] sm:$0xff]
    %v1330 = vld [vmem:[%s3 + $0x70] sm:$0xff]
    %v1331 = vld [vmem:[%s3 + $0x78] sm:$0xff]
    %v1332 = vld [vmem:[%s3 + $0x80] sm:$0xff]
    %v1333 = vld [vmem:[%s3 + $0x88] sm:$0xff]
    %v1334 = vld [vmem:[%s3 + $0x90] sm:$0xff]
    %v1335 = vld [vmem:[%s3 + $0x98] sm:$0xff]
    %v1336 = vld [vmem:[%s3 + $0xa0] sm:$0xff]
    %v1337 = vld [vmem:[%s3 + $0xa8] sm:$0xff]
    %v1338 = vld [vmem:[%s3 + $0xb0] sm:$0xff]
    %v1339 = vld [vmem:[%s3 + $0xb8] sm:$0xff]
    %v1340 = vld [vmem:[%s3 + $0xc0] sm:$0xff]
    %v1341 = vld [vmem:[%s3 + $0xc8] sm:$0xff]
    %v1342 = vld [vmem:[%s3 + $0xd0] sm:$0xff]
    %v1343 = vld [vmem:[%s3 + $0xd8] sm:$0xff]
    %v1344 = vld [vmem:[%s3 + $0xe0] sm:$0xff]
    %v1345 = vld [vmem:[%s3 + $0xe8] sm:$0xff]
    %v1346 = vld [vmem:[%s3 + $0xf0] sm:$0xff]
    %v1347 = vld [vmem:[%s3 + $0xf8] sm:$0xff]
    %v1348 = vld [vmem:[%s3 + $0x100] sm:$0xff]
    %v1349 = vld [vmem:[%s3 + $0x108] sm:$0xff]
    %v1350 = vld [vmem:[%s3 + $0x110] sm:$0xff]
    %v1351 = vld [vmem:[%s3 + $0x118] sm:$0xff]
    %v1352 = vld [vmem:[%s3 + $0x120] sm:$0xff]
    %v1353 = vld [vmem:[%s3 + $0x128] sm:$0xff]
    %v1354 = vld [vmem:[%s3 + $0x130] sm:$0xff]
    %v1355 = vld [vmem:[%s3 + $0x138] sm:$0xff]
    %v1356 = vld [vmem:[%s3 + $0x140] sm:$0xff]
    %v1357 = vld [vmem:[%s3 + $0x148] sm:$0xff]
    %v1358 = vld [vmem:[%s3 + $0x150] sm:$0xff]
    %v1359 = vld [vmem:[%s3 + $0x158] sm:$0xff]
    %v1360 = vld [vmem:[%s3 + $0x160] sm:$0xff]
    %v1361 = vld [vmem:[%s3 + $0x168] sm:$0xff]
    %v1362 = vld [vmem:[%s3 + $0x170] sm:$0xff]
    %v1363 = vld [vmem:[%s3 + $0x178] sm:$0xff]
    %v1364 = vld [vmem:[%s3 + $0x180] sm:$0xff]
    %v1365 = vld [vmem:[%s3 + $0x188] sm:$0xff]
    %v1366 = vld [vmem:[%s3 + $0x190] sm:$0xff]
    %v1367 = vld [vmem:[%s3 + $0x198] sm:$0xff]
    %v1368 = vld [vmem:[%s3 + $0x1a0] sm:$0xff]
    %v1369 = vld [vmem:[%s3 + $0x1a8] sm:$0xff]
    %v1370 = vld [vmem:[%s3 + $0x1b0] sm:$0xff]
    %v1371 = vld [vmem:[%s3 + $0x1b8] sm:$0xff]
    %v1372 = vld [vmem:[%s3 + $0x1c0] sm:$0xff]
    %v1373 = vld [vmem:[%s3 + $0x1c8] sm:$0xff]
    %v1374 = vld [vmem:[%s3 + $0x1d0] sm:$0xff]
    %v1375 = vld [vmem:[%s3 + $0x1d8] sm:$0xff]
    %v1376 = vld [vmem:[%s3 + $0x1e0] sm:$0xff]
    %v1377 = vld [vmem:[%s3 + $0x1e8] sm:$0xff]
    %v1378 = vld [vmem:[%s3 + $0x1f0] sm:$0xff]
    %v1379 = vld [vmem:[%s3 + $0x1f8] sm:$0xff]
    %v1380 = vld [vmem:[%s3 + $0x200] sm:$0xff]
    %v1381 = vld [vmem:[%s3 + $0x208] sm:$0xff]
    %v1382 = vld [vmem:[%s3 + $0x210] sm:$0xff]
    %v1383 = vld [vmem:[%s3 + $0x218] sm:$0xff]
    %v1384 = vld [vmem:[%s3 + $0x220] sm:$0xff]
    %v1385 = vld [vmem:[%s3 + $0x228] sm:$0xff]
    %v1386 = vld [vmem:[%s3 + $0x230] sm:$0xff]
    %v1387 = vld [vmem:[%s3 + $0x238] sm:$0xff]
    %v1388 = vld [vmem:[%s3 + $0x240] sm:$0xff]
    %v1389 = vld [vmem:[%s3 + $0x248] sm:$0xff]
    %v1390 = vld [vmem:[%s3 + $0x250] sm:$0xff]
    %v1391 = vld [vmem:[%s3 + $0x258] sm:$0xff]
    %v1392 = vld [vmem:[%s3 + $0x260] sm:$0xff]
    %v1393 = vld [vmem:[%s3 + $0x268] sm:$0xff]
    %v1394 = vld [vmem:[%s3 + $0x270] sm:$0xff]
    %v1395 = vld [vmem:[%s3 + $0x278] sm:$0xff]
    %v1396 = vld [vmem:[%s3 + $0x280] sm:$0xff]
    %v1397 = vld [vmem:[%s3 + $0x288] sm:$0xff]
    %v1398 = vld [vmem:[%s3 + $0x290] sm:$0xff]
    %v1399 = vld [vmem:[%s3 + $0x298] sm:$0xff]
    %v1400 = vld [vmem:[%s3 + $0x2a0] sm:$0xff]
    %v1401 = vld [vmem:[%s3 + $0x2a8] sm:$0xff]
    %v1402 = vld [vmem:[%s3 + $0x2b0] sm:$0xff]
    %v1403 = vld [vmem:[%s3 + $0x2b8] sm:$0xff]
    %v1404 = vld [vmem:[%s3 + $0x2c0] sm:$0xff]
    %v1405 = vld [vmem:[%s3 + $0x2c8] sm:$0xff]
    %v1406 = vld [vmem:[%s3 + $0x2d0] sm:$0xff]
    %v1407 = vld [vmem:[%s3 + $0x2d8] sm:$0xff]
    %v1408 = vld [vmem:[%s3 + $0x2e0] sm:$0xff]
    %v1409 = vld [vmem:[%s3 + $0x2e8] sm:$0xff]
    %v1410 = vld [vmem:[%s3 + $0x2f0] sm:$0xff]
    %v1411 = vld [vmem:[%s3 + $0x2f8] sm:$0xff]
    %v1412 = vld [vmem:[%s3 + $0x300] sm:$0xff]
    %v1413 = vld [vmem:[%s3 + $0x308] sm:$0xff]
    %v1414 = vld [vmem:[%s3 + $0x310] sm:$0xff]
    %v1415 = vld [vmem:[%s3 + $0x318] sm:$0xff]
    %v1416 = vld [vmem:[%s3 + $0x320] sm:$0xff]
    %v1417 = vld [vmem:[%s3 + $0x328] sm:$0xff]
    %v1418 = vld [vmem:[%s3 + $0x330] sm:$0xff]
    %v1419 = vld [vmem:[%s3 + $0x338] sm:$0xff]
    %v1420 = vld [vmem:[%s3 + $0x340] sm:$0xff]
    %v1421 = vld [vmem:[%s3 + $0x348] sm:$0xff]
    %v1422 = vld [vmem:[%s3 + $0x350] sm:$0xff]
    %v1423 = vld [vmem:[%s3 + $0x358] sm:$0xff]
    %v1424 = vld [vmem:[%s3 + $0x360] sm:$0xff]
    %v1425 = vld [vmem:[%s3 + $0x368] sm:$0xff]
    %v1426 = vld [vmem:[%s3 + $0x370] sm:$0xff]
    %v1427 = vld [vmem:[%s3 + $0x378] sm:$0xff]
    %v1428 = vld [vmem:[%s3 + $0x380] sm:$0xff]
    %v1429 = vld [vmem:[%s3 + $0x388] sm:$0xff]
    %v1430 = vld [vmem:[%s3 + $0x390] sm:$0xff]
    %v1431 = vld [vmem:[%s3 + $0x398] sm:$0xff]
    %v1432 = vld [vmem:[%s3 + $0x3a0] sm:$0xff]
    %v1433 = vld [vmem:[%s3 + $0x3a8] sm:$0xff]
    %v1434 = vld [vmem:[%s3 + $0x3b0] sm:$0x3]
    %vm1435 = vcmask 408576
    %v1437 = vsel %vm1435, %v1315, 0
    %vm1439 = vcmask 1041408
    %v1441 = vsel %vm1439, %v1434, 0
    %1443 = vmatprep.subr.mxu0 0.0
    %1444 = vmatpush1.msra.mxu0 %v1331
    %1445 = vmatprep.subr.mxu0 0.0
    %1446 = vmatpush1.msra.mxu0 %v1330
    %1447 = vmatprep.subr.mxu0 0.0
    %1448 = vmatpush1.msra.mxu0 %v1329
    %1449 = vmatprep.subr.mxu0 0.0
    %1450 = vmatpush1.msra.mxu0 %v1328
    %1451 = vmatprep.subr.mxu0 0.0
    %1452 = vmatpush1.msra.mxu0 %v1327
    %1453 = vmatprep.subr.mxu0 0.0
    %1454 = vmatpush1.msra.mxu0 %v1326
    %1455 = vmatprep.subr.mxu0 0.0
    %1456 = vmatpush1.msra.mxu0 %v1325
    %1457 = vmatprep.subr.mxu0 0.0
    %1458 = vmatpush1.msra.mxu0 %v1324
    %1459 = vmatprep.subr.mxu0 0.0
    %1460 = vmatpush1.msra.mxu0 %v1323
    %1461 = vmatprep.subr.mxu0 0.0
    %1462 = vmatpush1.msra.mxu0 %v1322
    %1463 = vmatprep.subr.mxu0 0.0
    %1464 = vmatpush1.msra.mxu0 %v1321
    %1465 = vmatprep.subr.mxu0 0.0
    %1466 = vmatpush1.msra.mxu0 %v1320
    %1467 = vmatprep.subr.mxu0 0.0
    %1468 = vmatpush1.msra.mxu0 %v1319
    %1469 = vmatprep.subr.mxu0 0.0
    %1470 = vmatpush1.msra.mxu0 %v1318
    %1471 = vmatprep.subr.mxu0 0.0
    %1472 = vmatpush1.msra.mxu0 %v1317
    %1473 = vmatprep.subr.mxu0 0.0
    %1474 = vmatpush1.msra.mxu0 %v1316
    %1475 = vmatprep.subr.mxu0 0.0
    %1476 = vmatpush2.msra.mxu0 %v1347
    %1477 = vmatprep.subr.mxu0 0.0
    %1478 = vmatpush2.msra.mxu0 %v1346
    %1479 = vmatprep.subr.mxu0 0.0
    %1480 = vmatpush2.msra.mxu0 %v1345
    %1481 = vmatprep.subr.mxu0 0.0
    %1482 = vmatpush2.msra.mxu0 %v1344
    %1483 = vmatprep.subr.mxu0 0.0
    %1484 = vmatpush2.msra.mxu0 %v1343
    %1485 = vmatprep.subr.mxu0 0.0
    %1486 = vmatpush2.msra.mxu0 %v1342
    %1487 = vmatprep.subr.mxu0 0.0
    %1488 = vmatpush2.msra.mxu0 %v1341
    %1489 = vmatprep.subr.mxu0 0.0
    %1490 = vmatpush2.msra.mxu0 %v1340
    %1491 = vmatprep.subr.mxu0 0.0
    %1492 = vmatpush2.msra.mxu0 %v1339
    %1493 = vmatprep.subr.mxu0 0.0
    %1494 = vmatpush2.msra.mxu0 %v1338
    %1495 = vmatprep.subr.mxu0 0.0
    %1496 = vmatpush2.msra.mxu0 %v1337
    %1497 = vmatprep.subr.mxu0 0.0
    %1498 = vmatpush2.msra.mxu0 %v1336
    %1499 = vmatprep.subr.mxu0 0.0
    %1500 = vmatpush2.msra.mxu0 %v1335
    %1501 = vmatprep.subr.mxu0 0.0
    %1502 = vmatpush2.msra.mxu0 %v1334
    %1503 = vmatprep.subr.mxu0 0.0
    %1504 = vmatpush2.msra.mxu0 %v1333
    %1505 = vmatprep.subr.mxu0 0.0
    %1506 = vmatpush2.msra.mxu0 %v1332
    %1507 = vmatprep.mubr.f32.mxu0 %v1309
    %1508 = vmatmul.mubr.f32.gmra.mxu0 %v1308
    %v1509 = vpop.f32.mrf.mxu0
    %v1510 = vadd.f32 0.0, %v1509
    %v1511 = vpop.f32.mrf.mxu0
    %1512 = vdwg.mxu0
    %1513 = vmatprep.subr.mxu0 0.0
    %1514 = vmatpush1.msra.mxu0 %v1363
    %1515 = vmatprep.subr.mxu0 0.0
    %1516 = vmatpush1.msra.mxu0 %v1362
    %1517 = vmatprep.subr.mxu0 0.0
    %1518 = vmatpush1.msra.mxu0 %v1361
    %1519 = vmatprep.subr.mxu0 0.0
    %1520 = vmatpush1.msra.mxu0 %v1360
    %1521 = vmatprep.subr.mxu0 0.0
    %1522 = vmatpush1.msra.mxu0 %v1359
    %1523 = vmatprep.subr.mxu0 0.0
    %1524 = vmatpush1.msra.mxu0 %v1358
    %1525 = vmatprep.subr.mxu0 0.0
    %1526 = vmatpush1.msra.mxu0 %v1357
    %1527 = vmatprep.subr.mxu0 0.0
    %1528 = vmatpush1.msra.mxu0 %v1356
    %1529 = vmatprep.subr.mxu0 0.0
    %1530 = vmatpush1.msra.mxu0 %v1355
    %1531 = vmatprep.subr.mxu0 0.0
    %1532 = vmatpush1.msra.mxu0 %v1354
    %1533 = vmatprep.subr.mxu0 0.0
    %1534 = vmatpush1.msra.mxu0 %v1353
    %1535 = vmatprep.subr.mxu0 0.0
    %1536 = vmatpush1.msra.mxu0 %v1352
    %1537 = vmatprep.subr.mxu0 0.0
    %1538 = vmatpush1.msra.mxu0 %v1351
    %1539 = vmatprep.subr.mxu0 0.0
    %1540 = vmatpush1.msra.mxu0 %v1350
    %1541 = vmatprep.subr.mxu0 0.0
    %1542 = vmatpush1.msra.mxu0 %v1349
    %1543 = vmatprep.subr.mxu0 0.0
    %1544 = vmatpush1.msra.mxu0 %v1348
    %1545 = vmatprep.subr.mxu0 0.0
    %1546 = vmatpush2.msra.mxu0 %v1379
    %1547 = vmatprep.subr.mxu0 0.0
    %1548 = vmatpush2.msra.mxu0 %v1378
    %1549 = vmatprep.subr.mxu0 0.0
    %1550 = vmatpush2.msra.mxu0 %v1377
    %1551 = vmatprep.subr.mxu0 0.0
    %1552 = vmatpush2.msra.mxu0 %v1376
    %1553 = vmatprep.subr.mxu0 0.0
    %1554 = vmatpush2.msra.mxu0 %v1375
    %1555 = vmatprep.subr.mxu0 0.0
    %1556 = vmatpush2.msra.mxu0 %v1374
    %1557 = vmatprep.subr.mxu0 0.0
    %1558 = vmatpush2.msra.mxu0 %v1373
    %1559 = vmatprep.subr.mxu0 0.0
    %1560 = vmatpush2.msra.mxu0 %v1372
    %1561 = vmatprep.subr.mxu0 0.0
    %1562 = vmatpush2.msra.mxu0 %v1371
    %1563 = vmatprep.subr.mxu0 0.0
    %1564 = vmatpush2.msra.mxu0 %v1370
    %1565 = vmatprep.subr.mxu0 0.0
    %1566 = vmatpush2.msra.mxu0 %v1369
    %1567 = vmatprep.subr.mxu0 0.0
    %1568 = vmatpush2.msra.mxu0 %v1368
    %1569 = vmatprep.subr.mxu0 0.0
    %1570 = vmatpush2.msra.mxu0 %v1367
    %1571 = vmatprep.subr.mxu0 0.0
    %1572 = vmatpush2.msra.mxu0 %v1366
    %1573 = vmatprep.subr.mxu0 0.0
    %1574 = vmatpush2.msra.mxu0 %v1365
    %1575 = vmatprep.subr.mxu0 0.0
    %1576 = vmatpush2.msra.mxu0 %v1364
    %1577 = vmatprep.mubr.f32.mxu0 %v1311
    %1578 = vmatmul.mubr.f32.gmra.mxu0 %v1310
    %v1579 = vpop.f32.mrf.mxu0
    %v1580 = vadd.f32 %v1510, %v1579
    %v1581 = vpop.f32.mrf.mxu0
    %1582 = vdwg.mxu0
    %1583 = vmatprep.subr.mxu0 0.0
    %1584 = vmatpush1.msra.mxu0 %v1395
    %1585 = vmatprep.subr.mxu0 0.0
    %1586 = vmatpush1.msra.mxu0 %v1394
    %1587 = vmatprep.subr.mxu0 0.0
    %1588 = vmatpush1.msra.mxu0 %v1393
    %1589 = vmatprep.subr.mxu0 0.0
    %1590 = vmatpush1.msra.mxu0 %v1392
    %1591 = vmatprep.subr.mxu0 0.0
    %1592 = vmatpush1.msra.mxu0 %v1391
    %1593 = vmatprep.subr.mxu0 0.0
    %1594 = vmatpush1.msra.mxu0 %v1390
    %1595 = vmatprep.subr.mxu0 0.0
    %1596 = vmatpush1.msra.mxu0 %v1389
    %1597 = vmatprep.subr.mxu0 0.0
    %1598 = vmatpush1.msra.mxu0 %v1388
    %1599 = vmatprep.subr.mxu0 0.0
    %1600 = vmatpush1.msra.mxu0 %v1387
    %1601 = vmatprep.subr.mxu0 0.0
    %1602 = vmatpush1.msra.mxu0 %v1386
    %1603 = vmatprep.subr.mxu0 0.0
    %1604 = vmatpush1.msra.mxu0 %v1385
    %1605 = vmatprep.subr.mxu0 0.0
    %1606 = vmatpush1.msra.mxu0 %v1384
    %1607 = vmatprep.subr.mxu0 0.0
    %1608 = vmatpush1.msra.mxu0 %v1383
    %1609 = vmatprep.subr.mxu0 0.0
    %1610 = vmatpush1.msra.mxu0 %v1382
    %1611 = vmatprep.subr.mxu0 0.0
    %1612 = vmatpush1.msra.mxu0 %v1381
    %1613 = vmatprep.subr.mxu0 0.0
    %1614 = vmatpush1.msra.mxu0 %v1380
    %1615 = vmatprep.subr.mxu0 0.0
    %1616 = vmatpush2.msra.mxu0 %v1411
    %1617 = vmatprep.subr.mxu0 0.0
    %1618 = vmatpush2.msra.mxu0 %v1410
    %1619 = vmatprep.subr.mxu0 0.0
    %1620 = vmatpush2.msra.mxu0 %v1409
    %1621 = vmatprep.subr.mxu0 0.0
    %1622 = vmatpush2.msra.mxu0 %v1408
    %1623 = vmatprep.subr.mxu0 0.0
    %1624 = vmatpush2.msra.mxu0 %v1407
    %1625 = vmatprep.subr.mxu0 0.0
    %1626 = vmatpush2.msra.mxu0 %v1406
    %1627 = vmatprep.subr.mxu0 0.0
    %1628 = vmatpush2.msra.mxu0 %v1405
    %1629 = vmatprep.subr.mxu0 0.0
    %1630 = vmatpush2.msra.mxu0 %v1404
    %1631 = vmatprep.subr.mxu0 0.0
    %1632 = vmatpush2.msra.mxu0 %v1403
    %1633 = vmatprep.subr.mxu0 0.0
    %1634 = vmatpush2.msra.mxu0 %v1402
    %1635 = vmatprep.subr.mxu0 0.0
    %1636 = vmatpush2.msra.mxu0 %v1401
    %1637 = vmatprep.subr.mxu0 0.0
    %1638 = vmatpush2.msra.mxu0 %v1400
    %1639 = vmatprep.subr.mxu0 0.0
    %1640 = vmatpush2.msra.mxu0 %v1399
    %1641 = vmatprep.subr.mxu0 0.0
    %1642 = vmatpush2.msra.mxu0 %v1398
    %1643 = vmatprep.subr.mxu0 0.0
    %1644 = vmatpush2.msra.mxu0 %v1397
    %1645 = vmatprep.subr.mxu0 0.0
    %1646 = vmatpush2.msra.mxu0 %v1396
    %1647 = vmatprep.mubr.f32.mxu0 %v1313
    %1648 = vmatmul.mubr.f32.gmra.mxu0 %v1312
    %v1649 = vpop.f32.mrf.mxu0
    %v1650 = vadd.f32 %v1580, %v1649
    %v1651 = vpop.f32.mrf.mxu0
    %1652 = vdwg.mxu0
    %1653 = vmatprep.subr.mxu0 0.0
    %1654 = vmatpush1.msra.mxu0 %v1427
    %1655 = vmatprep.subr.mxu0 0.0
    %1656 = vmatpush1.msra.mxu0 %v1426
    %1657 = vmatprep.subr.mxu0 0.0
    %1658 = vmatpush1.msra.mxu0 %v1425
    %1659 = vmatprep.subr.mxu0 0.0
    %1660 = vmatpush1.msra.mxu0 %v1424
    %1661 = vmatprep.subr.mxu0 0.0
    %1662 = vmatpush1.msra.mxu0 %v1423
    %1663 = vmatprep.subr.mxu0 0.0
    %1664 = vmatpush1.msra.mxu0 %v1422
    %1665 = vmatprep.subr.mxu0 0.0
    %1666 = vmatpush1.msra.mxu0 %v1421
    %1667 = vmatprep.subr.mxu0 0.0
    %1668 = vmatpush1.msra.mxu0 %v1420
    %1669 = vmatprep.subr.mxu0 0.0
    %1670 = vmatpush1.msra.mxu0 %v1419
    %1671 = vmatprep.subr.mxu0 0.0
    %1672 = vmatpush1.msra.mxu0 %v1418
    %1673 = vmatprep.subr.mxu0 0.0
    %1674 = vmatpush1.msra.mxu0 %v1417
    %1675 = vmatprep.subr.mxu0 0.0
    %1676 = vmatpush1.msra.mxu0 %v1416
    %1677 = vmatprep.subr.mxu0 0.0
    %1678 = vmatpush1.msra.mxu0 %v1415
    %1679 = vmatprep.subr.mxu0 0.0
    %1680 = vmatpush1.msra.mxu0 %v1414
    %1681 = vmatprep.subr.mxu0 0.0
    %1682 = vmatpush1.msra.mxu0 %v1413
    %1683 = vmatprep.subr.mxu0 0.0
    %1684 = vmatpush1.msra.mxu0 %v1412
    %1685 = vmatprep.subr.mxu0 0.0
    %1686 = vmatpush2.msra.mxu0 0.0
    %1687 = vmatprep.subr.mxu0 0.0
    %1688 = vmatpush2.msra.mxu0 0.0
    %1689 = vmatprep.subr.mxu0 0.0
    %1690 = vmatpush2.msra.mxu0 0.0
    %1691 = vmatprep.subr.mxu0 0.0
    %1692 = vmatpush2.msra.mxu0 0.0
    %1693 = vmatprep.subr.mxu0 0.0
    %1694 = vmatpush2.msra.mxu0 0.0
    %1695 = vmatprep.subr.mxu0 0.0
    %1696 = vmatpush2.msra.mxu0 0.0
    %1697 = vmatprep.subr.mxu0 0.0
    %1698 = vmatpush2.msra.mxu0 0.0
    %1699 = vmatprep.subr.mxu0 0.0
    %1700 = vmatpush2.msra.mxu0 0.0
    %1701 = vmatprep.subr.mxu0 0.0
    %1702 = vmatpush2.msra.mxu0 0.0
    %1703 = vmatprep.subr.mxu0 0.0
    %1704 = vmatpush2.msra.mxu0 %v1441
    %1705 = vmatprep.subr.mxu0 0.0
    %1706 = vmatpush2.msra.mxu0 %v1433
    %1707 = vmatprep.subr.mxu0 0.0
    %1708 = vmatpush2.msra.mxu0 %v1432
    %1709 = vmatprep.subr.mxu0 0.0
    %1710 = vmatpush2.msra.mxu0 %v1431
    %1711 = vmatprep.subr.mxu0 0.0
    %1712 = vmatpush2.msra.mxu0 %v1430
    %1713 = vmatprep.subr.mxu0 0.0
    %1714 = vmatpush2.msra.mxu0 %v1429
    %1715 = vmatprep.subr.mxu0 0.0
    %1716 = vmatpush2.msra.mxu0 %v1428
    %1717 = vmatprep.mubr.f32.mxu0 %v1437
    %1718 = vmatmul.mubr.f32.gmra.mxu0 %v1314
    %v1719 = vpop.f32.mrf.mxu0
    %v1720 = vadd.f32 %v1650, %v1719
    %v1721 = vpop.f32.mrf.mxu0
    %1722 = vdwg.mxu0
    %v1723 = vmul.f32 %v1720, %v1720
    %1725 = vrot.lane.b32.xlu0 %v1723, 100
    %v1726 = vpop.permute.xlu0 %1725
    %vm1728 = vcmask 818176
    %v1729 = vsel %vm1728, %v1720, %v1726
    %v1730 = vld [vmem:[%s4] sm:$0xff]
    %v1731 = vld [vmem:[%s4 + $0x8] sm:$0xff]
    %v1732 = vld [vmem:[%s4 + $0x10] sm:$0xff]
    %v1733 = vld [vmem:[%s4 + $0x18] sm:$0xff]
    %v1734 = vld [vmem:[%s4 + $0x20] sm:$0xff]
    %v1735 = vld [vmem:[%s4 + $0x28] sm:$0xff]
    %v1736 = vld [vmem:[%s4 + $0x30] sm:$0xff]
    %v1737 = vld [vmem:[%s4 + $0x38] sm:$0xff]
    %v1738 = vld [vmem:[%s4 + $0x40] sm:$0xff]
    %v1739 = vld [vmem:[%s4 + $0x48] sm:$0xff]
    %v1740 = vld [vmem:[%s4 + $0x50] sm:$0xff]
    %v1741 = vld [vmem:[%s4 + $0x58] sm:$0xff]
    %v1742 = vld [vmem:[%s4 + $0x60] sm:$0xff]
    %v1743 = vld [vmem:[%s4 + $0x68] sm:$0xff]
    %v1744 = vld [vmem:[%s4 + $0x70] sm:$0xff]
    %v1745 = vld [vmem:[%s4 + $0x78] sm:$0xff]
    %v1746 = vld [vmem:[%s4 + $0x80] sm:$0xff]
    %v1747 = vld [vmem:[%s4 + $0x88] sm:$0xff]
    %v1748 = vld [vmem:[%s4 + $0x90] sm:$0xff]
    %v1749 = vld [vmem:[%s4 + $0x98] sm:$0xff]
    %v1750 = vld [vmem:[%s4 + $0xa0] sm:$0xff]
    %v1751 = vld [vmem:[%s4 + $0xa8] sm:$0xff]
    %v1752 = vld [vmem:[%s4 + $0xb0] sm:$0xff]
    %v1753 = vld [vmem:[%s4 + $0xb8] sm:$0xff]
    %v1754 = vld [vmem:[%s4 + $0xc0] sm:$0xff]
    %vm1755 = vcmask 588800
    %v1756 = vsel %vm1755, %v1726, 0
    %1758 = vmatprep.subr.mxu0 0.0
    %1759 = vmatpush1.msra.mxu0 %v1745
    %1760 = vmatprep.subr.mxu0 0.0
    %1761 = vmatpush1.msra.mxu0 %v1744
    %1762 = vmatprep.subr.mxu0 0.0
    %1763 = vmatpush1.msra.mxu0 %v1743
    %1764 = vmatprep.subr.mxu0 0.0
    %1765 = vmatpush1.msra.mxu0 %v1742
    %1766 = vmatprep.subr.mxu0 0.0
    %1767 = vmatpush1.msra.mxu0 %v1741
    %1768 = vmatprep.subr.mxu0 0.0
    %1769 = vmatpush1.msra.mxu0 %v1740
    %1770 = vmatprep.subr.mxu0 0.0
    %1771 = vmatpush1.msra.mxu0 %v1739
    %1772 = vmatprep.subr.mxu0 0.0
    %1773 = vmatpush1.msra.mxu0 %v1738
    %1774 = vmatprep.subr.mxu0 0.0
    %1775 = vmatpush1.msra.mxu0 %v1737
    %1776 = vmatprep.subr.mxu0 0.0
    %1777 = vmatpush1.msra.mxu0 %v1736
    %1778 = vmatprep.subr.mxu0 0.0
    %1779 = vmatpush1.msra.mxu0 %v1735
    %1780 = vmatprep.subr.mxu0 0.0
    %1781 = vmatpush1.msra.mxu0 %v1734
    %1782 = vmatprep.subr.mxu0 0.0
    %1783 = vmatpush1.msra.mxu0 %v1733
    %1784 = vmatprep.subr.mxu0 0.0
    %1785 = vmatpush1.msra.mxu0 %v1732
    %1786 = vmatprep.subr.mxu0 0.0
    %1787 = vmatpush1.msra.mxu0 %v1731
    %1788 = vmatprep.subr.mxu0 0.0
    %1789 = vmatpush1.msra.mxu0 %v1730
    %1790 = vmatprep.subr.mxu0 0.0
    %1791 = vmatpush2.msra.mxu0 0.0
    %1792 = vmatprep.subr.mxu0 0.0
    %1793 = vmatpush2.msra.mxu0 0.0
    %1794 = vmatprep.subr.mxu0 0.0
    %1795 = vmatpush2.msra.mxu0 0.0
    %1796 = vmatprep.subr.mxu0 0.0
    %1797 = vmatpush2.msra.mxu0 0.0
    %1798 = vmatprep.subr.mxu0 0.0
    %1799 = vmatpush2.msra.mxu0 0.0
    %1800 = vmatprep.subr.mxu0 0.0
    %1801 = vmatpush2.msra.mxu0 0.0
    %1802 = vmatprep.subr.mxu0 0.0
    %1803 = vmatpush2.msra.mxu0 0.0
    %1804 = vmatprep.subr.mxu0 0.0
    %1805 = vmatpush2.msra.mxu0 %v1754
    %1806 = vmatprep.subr.mxu0 0.0
    %1807 = vmatpush2.msra.mxu0 %v1753
    %1808 = vmatprep.subr.mxu0 0.0
    %1809 = vmatpush2.msra.mxu0 %v1752
    %1810 = vmatprep.subr.mxu0 0.0
    %1811 = vmatpush2.msra.mxu0 %v1751
    %1812 = vmatprep.subr.mxu0 0.0
    %1813 = vmatpush2.msra.mxu0 %v1750
    %1814 = vmatprep.subr.mxu0 0.0
    %1815 = vmatpush2.msra.mxu0 %v1749
    %1816 = vmatprep.subr.mxu0 0.0
    %1817 = vmatpush2.msra.mxu0 %v1748
    %1818 = vmatprep.subr.mxu0 0.0
    %1819 = vmatpush2.msra.mxu0 %v1747
    %1820 = vmatprep.subr.mxu0 0.0
    %1821 = vmatpush2.msra.mxu0 %v1746
    %1822 = vmatprep.mubr.f32.mxu0 %v1756
    %1823 = vmatmul.mubr.f32.gmra.mxu0 %v1729
    %v1824 = vpop.f32.mrf.mxu0
    %v1825 = vadd.f32 0.0, %v1824
    %v1826 = vpop.f32.mrf.mxu0
    %1827 = vdwg.mxu0
    %v1828 = vld [vmem:[%s5] sm:$0x3f]
    %vm1829 = vcmask 48128
    %v1831 = vsel %vm1829, %v1828, 0
    %v1834 = vsel %vm45, %v1825, 0
    %1836 = vmatprep.subr.mxu0 0.0
    %1837 = vmatpush1.msra.mxu0 0.0
    %1838 = vmatprep.subr.mxu0 0.0
    %1839 = vmatpush1.msra.mxu0 0.0
    %1840 = vmatprep.subr.mxu0 0.0
    %1841 = vmatpush1.msra.mxu0 0.0
    %1842 = vmatprep.subr.mxu0 0.0
    %1843 = vmatpush1.msra.mxu0 0.0
    %1844 = vmatprep.subr.mxu0 0.0
    %1845 = vmatpush1.msra.mxu0 0.0
    %1846 = vmatprep.subr.mxu0 0.0
    %1847 = vmatpush1.msra.mxu0 0.0
    %1848 = vmatprep.subr.mxu0 0.0
    %1849 = vmatpush1.msra.mxu0 0.0
    %1850 = vmatprep.subr.mxu0 0.0
    %1851 = vmatpush1.msra.mxu0 0.0
    %1852 = vmatprep.subr.mxu0 0.0
    %1853 = vmatpush1.msra.mxu0 0.0
    %1854 = vmatprep.subr.mxu0 0.0
    %1855 = vmatpush1.msra.mxu0 0.0
    %1856 = vmatprep.subr.mxu0 0.0
    %1857 = vmatpush1.msra.mxu0 0.0
    %1858 = vmatprep.subr.mxu0 0.0
    %1859 = vmatpush1.msra.mxu0 0.0
    %1860 = vmatprep.subr.mxu0 0.0
    %1861 = vmatpush1.msra.mxu0 0.0
    %1862 = vmatprep.subr.mxu0 0.0
    %1863 = vmatpush1.msra.mxu0 0.0
    %1864 = vmatprep.subr.mxu0 0.0
    %1865 = vmatpush1.msra.mxu0 0.0
    %1866 = vmatprep.subr.mxu0 0.0
    %1867 = vmatpush1.msra.mxu0 %v1834
    %1868 = vmatprep.subr.mxu0 0.0
    %1869 = vmatpush2.msra.mxu0 0.0
    %1870 = vmatprep.subr.mxu0 0.0
    %1871 = vmatpush2.msra.mxu0 0.0
    %1872 = vmatprep.subr.mxu0 0.0
    %1873 = vmatpush2.msra.mxu0 0.0
    %1874 = vmatprep.subr.mxu0 0.0
    %1875 = vmatpush2.msra.mxu0 0.0
    %1876 = vmatprep.subr.mxu0 0.0
    %1877 = vmatpush2.msra.mxu0 0.0
    %1878 = vmatprep.subr.mxu0 0.0
    %1879 = vmatpush2.msra.mxu0 0.0
    %1880 = vmatprep.subr.mxu0 0.0
    %1881 = vmatpush2.msra.mxu0 0.0
    %1882 = vmatprep.subr.mxu0 0.0
    %1883 = vmatpush2.msra.mxu0 0.0
    %1884 = vmatprep.subr.mxu0 0.0
    %1885 = vmatpush2.msra.mxu0 0.0
    %1886 = vmatprep.subr.mxu0 0.0
    %1887 = vmatpush2.msra.mxu0 0.0
    %1888 = vmatprep.subr.mxu0 0.0
    %1889 = vmatpush2.msra.mxu0 0.0
    %1890 = vmatprep.subr.mxu0 0.0
    %1891 = vmatpush2.msra.mxu0 0.0
    %1892 = vmatprep.subr.mxu0 0.0
    %1893 = vmatpush2.msra.mxu0 0.0
    %1894 = vmatprep.subr.mxu0 0.0
    %1895 = vmatpush2.msra.mxu0 0.0
    %1896 = vmatprep.subr.mxu0 0.0
    %1897 = vmatpush2.msra.mxu0 0.0
    %1898 = vmatprep.subr.mxu0 0.0
    %1899 = vmatpush2.msra.mxu0 0.0
    %1900 = vmatprep.mubr.f32.mxu0 0.0
    %1901 = vmatmul.mubr.f32.gmra.mxu0 %v1831
    %v1902 = vpop.f32.mrf.mxu0
    %v1903 = vadd.f32 0.0, %v1902
    %v1904 = vpop.f32.mrf.mxu0
    %1905 = vdwg.mxu0
    %v1906 = vrcp.pop 200.0
    %v1907 = vmul.f32 %v1903, %v1906
    %v1908 = vmul.f32 %v1907, %v1907
    %1910 = vrot.lane.b32.xlu0 %v1908, 1
    %v1911 = vpop.permute.xlu0 %1910
    %v1913 = vsub.f32 %v1907, %v1911
    %v1914 = vld [vmem:[%s6] sm:$0x3f]
    %v1915 = vadd.f32 %v1913, 1e-05
    %v1916 = vrsqrt.pop %v1915
    %1918 = vrot.lane.b32.xlu0 %v1916, 127
    %v1919 = vpop.permute.xlu0 %1918
    %v1921 = vmul.f32 %v1914, %v1919
    %v1922 = vld [vmem:[%s7] sm:$0x3f]
    %v1923 = vmul.f32 %v1907, %v1921
    %v1924 = vsub.f32 %v1922, %v1923
    %1926 = vset.pattern.permute.xlu0 0
    %1927 = vperm.xlu0 %1926, %v1921
    %v1928 = vpop.permute.xlu0 %1927
    %v1930 = vmul.f32 %v1720, %v1928
    %1932 = vset.pattern.permute.xlu0 0
    %1933 = vperm.xlu0 %1932, %v1924
    %v1934 = vpop.permute.xlu0 %1933
    %v1936 = vadd.f32 %v1930, %v1934
    %v1937 = vld [vmem:[%s8] sm:$0xff]
    %v1938 = vld [vmem:[%s8 + $0x8] sm:$0xff]
    %v1939 = vld [vmem:[%s8 + $0x10] sm:$0xff]
    %v1940 = vld [vmem:[%s8 + $0x18] sm:$0xff]
    %v1941 = vld [vmem:[%s8 + $0x20] sm:$0xff]
    %v1942 = vld [vmem:[%s8 + $0x28] sm:$0xff]
    %v1943 = vld [vmem:[%s8 + $0x30] sm:$0xff]
    %v1944 = vld [vmem:[%s8 + $0x38] sm:$0xff]
    %v1945 = vld [vmem:[%s8 + $0x40] sm:$0xff]
    %v1946 = vld [vmem:[%s8 + $0x48] sm:$0xff]
    %v1947 = vld [vmem:[%s8 + $0x50] sm:$0xff]
    %v1948 = vld [vmem:[%s8 + $0x58] sm:$0xff]
    %v1949 = vld [vmem:[%s8 + $0x60] sm:$0xf]
    %v1951 = vsel %vm1728, %v1936, 0
    %vm1953 = vcmask 1043456
    %v1955 = vsel %vm1953, %v1949, 0
    %1957 = vmatprep.subr.mxu0 0.0
    %1958 = vmatpush1.msra.mxu0 0.0
    %1959 = vmatprep.subr.mxu0 0.0
    %1960 = vmatpush1.msra.mxu0 0.0
    %1961 = vmatprep.subr.mxu0 0.0
    %1962 = vmatpush1.msra.mxu0 0.0
    %1963 = vmatprep.subr.mxu0 0.0
    %1964 = vmatpush1.msra.mxu0 %v1955
    %1965 = vmatprep.subr.mxu0 0.0
    %1966 = vmatpush1.msra.mxu0 %v1948
    %1967 = vmatprep.subr.mxu0 0.0
    %1968 = vmatpush1.msra.mxu0 %v1947
    %1969 = vmatprep.subr.mxu0 0.0
    %1970 = vmatpush1.msra.mxu0 %v1946
    %1971 = vmatprep.subr.mxu0 0.0
    %1972 = vmatpush1.msra.mxu0 %v1945
    %1973 = vmatprep.subr.mxu0 0.0
    %1974 = vmatpush1.msra.mxu0 %v1944
    %1975 = vmatprep.subr.mxu0 0.0
    %1976 = vmatpush1.msra.mxu0 %v1943
    %1977 = vmatprep.subr.mxu0 0.0
    %1978 = vmatpush1.msra.mxu0 %v1942
    %1979 = vmatprep.subr.mxu0 0.0
    %1980 = vmatpush1.msra.mxu0 %v1941
    %1981 = vmatprep.subr.mxu0 0.0
    %1982 = vmatpush1.msra.mxu0 %v1940
    %1983 = vmatprep.subr.mxu0 0.0
    %1984 = vmatpush1.msra.mxu0 %v1939
    %1985 = vmatprep.subr.mxu0 0.0
    %1986 = vmatpush1.msra.mxu0 %v1938
    %1987 = vmatprep.subr.mxu0 0.0
    %1988 = vmatpush1.msra.mxu0 %v1937
    %1989 = vmatprep.subr.mxu0 0.0
    %1990 = vmatpush2.msra.mxu0 0.0
    %1991 = vmatprep.subr.mxu0 0.0
    %1992 = vmatpush2.msra.mxu0 0.0
    %1993 = vmatprep.subr.mxu0 0.0
    %1994 = vmatpush2.msra.mxu0 0.0
    %1995 = vmatprep.subr.mxu0 0.0
    %1996 = vmatpush2.msra.mxu0 0.0
    %1997 = vmatprep.subr.mxu0 0.0
    %1998 = vmatpush2.msra.mxu0 0.0
    %1999 = vmatprep.subr.mxu0 0.0
    %2000 = vmatpush2.msra.mxu0 0.0
    %2001 = vmatprep.subr.mxu0 0.0
    %2002 = vmatpush2.msra.mxu0 0.0
    %2003 = vmatprep.subr.mxu0 0.0
    %2004 = vmatpush2.msra.mxu0 0.0
    %2005 = vmatprep.subr.mxu0 0.0
    %2006 = vmatpush2.msra.mxu0 0.0
    %2007 = vmatprep.subr.mxu0 0.0
    %2008 = vmatpush2.msra.mxu0 0.0
    %2009 = vmatprep.subr.mxu0 0.0
    %2010 = vmatpush2.msra.mxu0 0.0
    %2011 = vmatprep.subr.mxu0 0.0
    %2012 = vmatpush2.msra.mxu0 0.0
    %2013 = vmatprep.subr.mxu0 0.0
    %2014 = vmatpush2.msra.mxu0 0.0
    %2015 = vmatprep.subr.mxu0 0.0
    %2016 = vmatpush2.msra.mxu0 0.0
    %2017 = vmatprep.subr.mxu0 0.0
    %2018 = vmatpush2.msra.mxu0 0.0
    %2019 = vmatprep.subr.mxu0 0.0
    %2020 = vmatpush2.msra.mxu0 0.0
    %2021 = vmatprep.mubr.f32.mxu0 0.0
    %2022 = vmatmul.mubr.f32.gmra.mxu0 %v1951
    %v2023 = vpop.f32.mrf.mxu0
    %v2024 = vadd.f32 0.0, %v2023
    %v2025 = vpop.f32.mrf.mxu0
    %2026 = vdwg.mxu0
    %v2028 = vrot.slane %v2024, 1
    %2029 = vrot.lane.b32.xlu0 %v2028, 118
    %v2030 = vpop.permute.xlu0 %2029
    %v2032 = vadd.f32 %v2024, %v2030
    %v2033 = vrot.slane %v2024, 2
    %2034 = vrot.lane.b32.xlu0 %v2033, 108
    %v2035 = vpop.permute.xlu0 %2034
    %v2037 = vadd.f32 %v2032, %v2035
    %v2039 = vrot.slane %v2037, 2
    %vm2041 = vcmask 1040384
    %v2042 = vsel %vm2041, %v2037, %v2039
    %v2043 = vld [vmem:[%s9] sm:$0x1]
    %v2045 = vlaneseq
    %v2046 = vshrl.u32 %v2045, 7
    %v2047 = vsub.s32 0, %v2046
    %v2048 = vrot.slane %v2043, %v2047
    %v2050 = vadd.f32 %v2042, %v2048
    %vm2051 = vcmask 74752
    %2052 = vst.msk [vmem:[#allocation3] sm:$0x3] %vm2051, %v2050
    // Predicated region
    $region42: #{model_forward.1} parent=1 // pred_check
      _
    $region43: #{model_forward.1} parent=1 // pred_check_branch
      %2054 = sbr.rel (0) target = $region45
    $region44: #{model_forward.1} parent=1 // pred_region
      %s2056 = ssub.s32 32, 32
      %2057 = vsyncadd [#allocation4], %s2056
      %s2059 = sshll.u32 [#allocation3], 4
      %s2060 = int_to_ptr.vmem [resolvable:$true] %s2059
      %2062 = dma.vmem_to_hbm [thread:$0]  %s2060, 32, %s10, [#allocation4]
    $region45: #{model_forward.1} parent=1 // pred_fallthru
      _
    // Predicated region
    $region46: #{model_forward.1} parent=1 // pred_check
      _
    $region47: #{model_forward.1} parent=1 // pred_check_branch
      %2064 = sbr.rel (0) target = $region49
    $region48: #{model_forward.1} parent=1 // pred_region
      %2065 = dma.done [#allocation4], 32
    $region49: #{model_forward.1} parent=1 // pred_fallthru
      _
    %2066 = vsyncpa [#allocation4], 1

</llo_original>
